<compile_context>
chip_gen: v7x
topology: tpu7x:2x2x1
jax: 0.10.0
libtpu: 0.0.40
codegen_flags: <defaults>
</compile_context>

<pallas_src>
import functools
import math

import jax
import jax.numpy as jnp
import numpy as np
from jax.experimental import pallas as pl
from jax.experimental.pallas import tpu as pltpu

_LANE = 128
_SUBLANE = 8


def _round_up(x, m):
    return ((x + m - 1) // m) * m


def _vmem_budget_bytes():
    """Generation-aware budgets (v5e/v6e: 128 MiB VMEM; v7x: 64 MiB per TC)."""
    phys = 64 * 1024 * 1024                      # conservative fallback (v7x per-TC)
    try:
        info = pltpu.get_tpu_info()
        phys = int(getattr(info, "vmem_capacity_bytes", phys))
    except Exception:
        pass
    budget = max(16 * 1024 * 1024, min(int(phys * 0.55), 64 * 1024 * 1024))
    limit = max(32 * 1024 * 1024, min(int(phys * 0.75), 96 * 1024 * 1024))
    return budget, limit


def _choose_toh(*, b, oh, ow, wp, kh, kw, stride, dilation, cin_pad, cout_pad,
                fuse_taps, itemsize, budget):
    """Number of output rows each grid step produces (M per step = toh*B*OW)."""
    lane = lambda n: _round_up(n, _LANE)
    k_fused = kh * kw * cin_pad

    def vmem_bytes(t):
        h_span = (t - 1) * stride + (kh - 1) * dilation + 1
        m = t * b * ow
        in_b = 2 * h_span * b * _round_up(wp, 16) * lane(cin_pad) * itemsize  # dbl-buffered input span
        out_b = 2 * m * lane(cout_pad) * 4                                    # dbl-buffered output block
        w_b = 2 * kh * kw * cin_pad * lane(cout_pad) * itemsize               # resident (dbl-buffered) weight
        lhs_b = (m * lane(k_fused) * itemsize) if fuse_taps else 0            # im2col scratch (single)
        acc_b = 2 * m * lane(cout_pad) * 4                                    # f32 acc / partial values
        return in_b + out_b + w_b + lhs_b + acc_b

    cap = oh if oh < 2 else -(-oh // 2)               # keep >= 2 grid steps (2 TCs on v7x)
    cap = max(1, min(cap, max(1, 4096 // max(1, b * ow))))   # soft cap on M per step
    while cap > 1 and vmem_bytes(cap) > budget:
        cap = max(1, cap // 2)
    toh = cap
    for d in range(cap, 0, -1):                       # prefer a divisor of OH (no wasted rows)
        if oh % d == 0:
            if 2 * d >= cap:
                toh = d
            break
    return toh


def _make_kernel(*, toh, kh, kw, stride, dilation, b, ow, cin_pad, cout_pad,
                 fuse_taps):
    m = toh * b * ow
    k_fused = kh * kw * cin_pad

    def h_idx(i):
        s = i * dilation
        return pl.ds(s, toh, stride=stride) if stride > 1 else pl.ds(s, toh)

    def w_idx(j):
        s = j * dilation
        return pl.ds(s, ow, stride=stride) if stride > 1 else pl.ds(s, ow)

    def kernel(x_ref, w_ref, b_ref, o_ref, *scratch):
        # x_ref: (h_span, B, Wp, cin_pad)    compute dtype
        # w_ref: (K_fused, cout_pad) or (kh, kw, cin_pad, cout_pad)
        # b_ref: (1, cout_pad) f32
        # o_ref: (toh, B, OW, cout_pad) f32
        if fuse_taps:
            lhs_ref = scratch[0]                       # (toh, B, OW, K_fused) compute dtype
            for i in range(kh):                        # small static tap loop (kh*kw <= ~9)
                for j in range(kw):
                    k0 = (i * kw + j) * cin_pad
                    lhs_ref[:, :, :, k0:k0 + cin_pad] = x_ref[h_idx(i), :, w_idx(j), :]
            lhs = lhs_ref[...].reshape(m, k_fused)
            acc = jnp.dot(lhs, w_ref[...], preferred_element_type=jnp.float32)
        else:
            acc = None
            for i in range(kh):
                for j in range(kw):
                    lhs = x_ref[h_idx(i), :, w_idx(j), :].reshape(m, cin_pad)
                    p = jnp.dot(lhs, w_ref[i, j], preferred_element_type=jnp.float32)
                    acc = p if acc is None else acc + p
        out = acc + b_ref[...]                         # one bias broadcast per step
        o_ref[...] = out.reshape(toh, b, ow, cout_pad).astype(o_ref.dtype)

    return kernel


@functools.partial(jax.jit,
                   static_argnames=("stride", "padding", "dilation", "use_bf16"))
def custom_conv2d_forward(x, weight, bias, *, stride=1, padding=0, dilation=1,
                          use_bf16=True):
    """x: (B, Cin, H, W) NCHW, weight: (Cout, Cin, KH, KW), bias: (Cout,) or None.
    Returns (B, Cout, OH, OW) float32 (matches torch.zeros default dtype)."""
    b, cin, h, w = x.shape
    cout, cin_w, kh, kw = weight.shape
    if cin_w != cin:
        raise ValueError("groups != 1 is not supported (reference forward is groups=1)")

    oh = (h + 2 * padding - dilation * (kh - 1) - 1) // stride + 1
    ow = (w + 2 * padding - dilation * (kw - 1) - 1) // stride + 1

    compute_dtype = jnp.bfloat16 if use_bf16 else jnp.float32
    itemsize = np.dtype(compute_dtype).itemsize
    cin_pad = _round_up(cin, _SUBLANE)
    cout_pad = _round_up(cout, _LANE)
    wp = w + 2 * padding
    fuse_taps = cin_pad < _LANE                      # small channels: fuse taps into K

    budget, vmem_limit = _vmem_budget_bytes()
    toh = _choose_toh(b=b, oh=oh, ow=ow, wp=wp, kh=kh, kw=kw, stride=stride,
                      dilation=dilation, cin_pad=cin_pad, cout_pad=cout_pad,
                      fuse_taps=fuse_taps, itemsize=itemsize, budget=budget)
    oh_pad = _round_up(oh, toh)
    grid_t = oh_pad // toh
    h_span = (toh - 1) * stride + (kh - 1) * dilation + 1

    # Padded (Hp, B, Wp, Cin_pad) input; Hp covers the deepest row any step reads.
    need_h = (grid_t - 1) * toh * stride + h_span
    extra_h = max(0, need_h - (h + 2 * padding))
    xt = jnp.transpose(x, (2, 0, 3, 1)).astype(compute_dtype)         # (H, B, W, Cin)
    xp = jnp.pad(xt, ((padding, padding + extra_h), (0, 0),
                      (padding, padding), (0, cin_pad - cin)))         # (Hp, B, Wp, Cin_pad)

    # Per-step contiguous H spans (halo duplicated once) so each grid step is a
    # single large auto-pipelined DMA.
    h_gather = (jnp.arange(grid_t) * (toh * stride))[:, None] + jnp.arange(h_span)[None, :]
    xb = jnp.take(xp, h_gather.reshape(-1), axis=0)    # (grid_t*h_span, B, Wp, Cin_pad)

    # Weight -> (kh, kw, cin_pad, cout_pad); fused path flattens taps into K.
    w_t = jnp.transpose(weight, (2, 3, 1, 0)).astype(compute_dtype)
    w_t = jnp.pad(w_t, ((0, 0), (0, 0), (0, cin_pad - cin), (0, cout_pad - cout)))
    if fuse_taps:
        w_arr = w_t.reshape(kh * kw * cin_pad, cout_pad)
        w_spec = pl.BlockSpec((kh * kw * cin_pad, cout_pad), lambda t: (0, 0))
    else:
        w_arr = w_t
        w_spec = pl.BlockSpec((kh, kw, cin_pad, cout_pad), lambda t: (0, 0, 0, 0))

    if bias is None:
        b_row = jnp.zeros((1, cout_pad), jnp.float32)
    else:
        b_row = jnp.pad(bias.astype(jnp.float32).reshape(1, cout),
                        ((0, 0), (0, cout_pad - cout)))

    x_spec = pl.BlockSpec((h_span, b, wp, cin_pad), lambda t: (t, 0, 0, 0))
    bias_spec = pl.BlockSpec((1, cout_pad), lambda t: (0, 0))
    out_spec = pl.BlockSpec((toh, b, ow, cout_pad), lambda t: (t, 0, 0, 0))

    scratch = []
    if fuse_taps:
        scratch.append(pltpu.VMEM((toh, b, ow, kh * kw * cin_pad), compute_dtype))

    kernel = _make_kernel(toh=toh, kh=kh, kw=kw, stride=stride, dilation=dilation,
                          b=b, ow=ow, cin_pad=cin_pad, cout_pad=cout_pad,
                          fuse_taps=fuse_taps)

    flops = 2 * oh_pad * b * ow * kh * kw * cin_pad * cout_pad
    bytes_accessed = (xb.size * itemsize + w_arr.size * itemsize
                      + oh_pad * b * ow * cout_pad * 4)

    out = pl.pallas_call(
        kernel,
        out_shape=jax.ShapeDtypeStruct((oh_pad, b, ow, cout_pad), jnp.float32),
        grid_spec=pltpu.PrefetchScalarGridSpec(
            num_scalar_prefetch=0,
            grid=(grid_t,),
            in_specs=[x_spec, w_spec, bias_spec],
            out_specs=out_spec,
            scratch_shapes=scratch,
        ),
        compiler_params=pltpu.CompilerParams(
            dimension_semantics=("parallel",),
            vmem_limit_bytes=vmem_limit),
        cost_estimate=pl.CostEstimate(flops=flops, transcendentals=0,
                                      bytes_accessed=bytes_accessed),
    )(xb, w_arr, b_row)

    out = out[:oh, :, :, :cout]                      # (OH, B, OW, Cout)
    return jnp.transpose(out, (1, 3, 0, 2))          # (B, Cout, OH, OW)


def init_params(key, in_channels, out_channels, kernel_size, groups=1, use_bias=True):
    """Deterministic re-implementation of the torch init (kaiming_uniform a=sqrt(5))."""
    fan_in = (in_channels // groups) * kernel_size * kernel_size
    bound = 1.0 / math.sqrt(fan_in)
    kw_key, b_key = jax.random.split(key)
    weight = jax.random.uniform(
        kw_key, (out_channels, in_channels // groups, kernel_size, kernel_size),
        minval=-bound, maxval=bound, dtype=jnp.float32)
    bias = None
    if use_bias:
        bias = jax.random.uniform(b_key, (out_channels,),
                                  minval=-bound, maxval=bound, dtype=jnp.float32)
    return weight, bias


if __name__ == "__main__":
    key = jax.random.PRNGKey(0)
    kx, kp = jax.random.split(key)

    B, C_IN, H, W = 2, 4, 16, 16
    C_OUT, KSIZE = 8, 3
    STRIDE, PAD, DIL = 1, 1, 1

    x = jax.random.normal(kx, (B, C_IN, H, W), dtype=jnp.float32)
    weight, bias = init_params(kp, C_IN, C_OUT, KSIZE, groups=1, use_bias=True)

    # Exact-f32 path: check tightly against XLA's conv.
    out_f32 = custom_conv2d_forward(x, weight, bias, stride=STRIDE, padding=PAD,
                                    dilation=DIL, use_bf16=False)
    out_f32 = jax.block_until_ready(out_f32)
    ref_f32 = jax.lax.conv_general_dilated(
        x, weight, window_strides=(STRIDE, STRIDE),
        padding=[(PAD, PAD), (PAD, PAD)], rhs_dilation=(DIL, DIL),
        dimension_numbers=("NCHW", "OIHW", "NCHW"),
    ) + bias.reshape(1, C_OUT, 1, 1)
    assert out_f32.shape == (B, C_OUT, H, W)
    np.testing.assert_allclose(np.asarray(out_f32), np.asarray(ref_f32),
                               rtol=1e-4, atol=1e-4)

    # Fast bf16-operand / f32-accumulation path: check against a bf16-operand reference.
    out_bf16 = custom_conv2d_forward(x, weight, bias, stride=STRIDE, padding=PAD,
                                     dilation=DIL, use_bf16=True)
    out_bf16 = jax.block_until_ready(out_bf16)
    ref_bf16 = jax.lax.conv_general_dilated(
        x.astype(jnp.bfloat16), weight.astype(jnp.bfloat16),
        window_strides=(STRIDE, STRIDE), padding=[(PAD, PAD), (PAD, PAD)],
        rhs_dilation=(DIL, DIL), dimension_numbers=("NCHW", "OIHW", "NCHW"),
        preferred_element_type=jnp.float32,
    ) + bias.reshape(1, C_OUT, 1, 1)
    np.testing.assert_allclose(np.asarray(out_bf16), np.asarray(ref_bf16),
                               rtol=1e-2, atol=1e-2)

    print("KERNEL_OK")
</pallas_src>

<mosaic_0001>
module attributes {stable_mosaic.version = 11 : i64} {
  func.func @kernel(%arg0: i32, %arg1: memref<10x2x18x8xf32, #tpu.memory_space<vmem>>, %arg2: memref<72x128xf32, #tpu.memory_space<vmem>>, %arg3: memref<1x128xf32, #tpu.memory_space<vmem>>, %arg4: memref<8x2x16x128xf32, #tpu.memory_space<vmem>>, %arg5: memref<8x2x16x72xf32, #tpu.memory_space<vmem>>) attributes {dimension_semantics = [#tpu.dimension_semantics<parallel>], iteration_bounds = array<i64: 2>, scalar_prefetch = 0 : i64, scratch_operands = 1 : i64, tpu.core_type = #tpu.core_type<tc>, window_params = [{transform_indices = @transform_0, window_bounds = array<i64: 10, 2, 18, 8>}, {pipeline_mode = #tpu.pipeline_mode<synchronous>, transform_indices = @transform_1, window_bounds = array<i64: 72, 128>}, {pipeline_mode = #tpu.pipeline_mode<synchronous>, transform_indices = @transform_2, window_bounds = array<i64: 1, 128>}, {transform_indices = @transform_3, window_bounds = array<i64: 8, 2, 16, 128>}]} {
    %c0 = arith.constant 0 : index
    %c0_0 = arith.constant 0 : index
    %c0_1 = arith.constant 0 : index
    %c0_2 = arith.constant 0 : index
    %0 = vector.load %arg1[%c0, %c0_0, %c0_1, %c0_2] : memref<10x2x18x8xf32, #tpu.memory_space<vmem>>, vector<8x2x16x8xf32>
    %c0_3 = arith.constant 0 : index
    %c0_4 = arith.constant 0 : index
    %c0_5 = arith.constant 0 : index
    %c0_6 = arith.constant 0 : index
    %1 = vector.load %arg5[%c0_3, %c0_4, %c0_5, %c0_6] : memref<8x2x16x72xf32, #tpu.memory_space<vmem>>, vector<8x2x16x8xf32>
    tpu.vector_store %arg5[%c0_3, %c0_4, %c0_5, %c0_6], %0 {strides = array<i32>} : memref<8x2x16x72xf32, #tpu.memory_space<vmem>>, vector<8x2x16x8xf32>,
    %c0_7 = arith.constant 0 : index
    %c0_8 = arith.constant 0 : index
    %c1 = arith.constant 1 : index
    %c0_9 = arith.constant 0 : index
    %2 = vector.load %arg1[%c0_7, %c0_8, %c1, %c0_9] : memref<10x2x18x8xf32, #tpu.memory_space<vmem>>, vector<8x2x16x8xf32>
    %c0_10 = arith.constant 0 : index
    %c0_11 = arith.constant 0 : index
    %c0_12 = arith.constant 0 : index
    %c8 = arith.constant 8 : index
    %3 = vector.load %arg5[%c0_10, %c0_11, %c0_12, %c8] : memref<8x2x16x72xf32, #tpu.memory_space<vmem>>, vector<8x2x16x8xf32>
    tpu.vector_store %arg5[%c0_10, %c0_11, %c0_12, %c8], %2 {strides = array<i32>} : memref<8x2x16x72xf32, #tpu.memory_space<vmem>>, vector<8x2x16x8xf32>,
    %c0_13 = arith.constant 0 : index
    %c0_14 = arith.constant 0 : index
    %c2 = arith.constant 2 : index
    %c0_15 = arith.constant 0 : index
    %4 = vector.load %arg1[%c0_13, %c0_14, %c2, %c0_15] : memref<10x2x18x8xf32, #tpu.memory_space<vmem>>, vector<8x2x16x8xf32>
    %c0_16 = arith.constant 0 : index
    %c0_17 = arith.constant 0 : index
    %c0_18 = arith.constant 0 : index
    %c16 = arith.constant 16 : index
    %5 = vector.load %arg5[%c0_16, %c0_17, %c0_18, %c16] : memref<8x2x16x72xf32, #tpu.memory_space<vmem>>, vector<8x2x16x8xf32>
    tpu.vector_store %arg5[%c0_16, %c0_17, %c0_18, %c16], %4 {strides = array<i32>} : memref<8x2x16x72xf32, #tpu.memory_space<vmem>>, vector<8x2x16x8xf32>,
    %c1_19 = arith.constant 1 : index
    %c0_20 = arith.constant 0 : index
    %c0_21 = arith.constant 0 : index
    %c0_22 = arith.constant 0 : index
    %6 = vector.load %arg1[%c1_19, %c0_20, %c0_21, %c0_22] : memref<10x2x18x8xf32, #tpu.memory_space<vmem>>, vector<8x2x16x8xf32>
    %c0_23 = arith.constant 0 : index
    %c0_24 = arith.constant 0 : index
    %c0_25 = arith.constant 0 : index
    %c24 = arith.constant 24 : index
    %7 = vector.load %arg5[%c0_23, %c0_24, %c0_25, %c24] : memref<8x2x16x72xf32, #tpu.memory_space<vmem>>, vector<8x2x16x8xf32>
    tpu.vector_store %arg5[%c0_23, %c0_24, %c0_25, %c24], %6 {strides = array<i32>} : memref<8x2x16x72xf32, #tpu.memory_space<vmem>>, vector<8x2x16x8xf32>,
    %c1_26 = arith.constant 1 : index
    %c0_27 = arith.constant 0 : index
    %c1_28 = arith.constant 1 : index
    %c0_29 = arith.constant 0 : index
    %8 = vector.load %arg1[%c1_26, %c0_27, %c1_28, %c0_29] : memref<10x2x18x8xf32, #tpu.memory_space<vmem>>, vector<8x2x16x8xf32>
    %c0_30 = arith.constant 0 : index
    %c0_31 = arith.constant 0 : index
    %c0_32 = arith.constant 0 : index
    %c32 = arith.constant 32 : index
    %9 = vector.load %arg5[%c0_30, %c0_31, %c0_32, %c32] : memref<8x2x16x72xf32, #tpu.memory_space<vmem>>, vector<8x2x16x8xf32>
    tpu.vector_store %arg5[%c0_30, %c0_31, %c0_32, %c32], %8 {strides = array<i32>} : memref<8x2x16x72xf32, #tpu.memory_space<vmem>>, vector<8x2x16x8xf32>,
    %c1_33 = arith.constant 1 : index
    %c0_34 = arith.constant 0 : index
    %c2_35 = arith.constant 2 : index
    %c0_36 = arith.constant 0 : index
    %10 = vector.load %arg1[%c1_33, %c0_34, %c2_35, %c0_36] : memref<10x2x18x8xf32, #tpu.memory_space<vmem>>, vector<8x2x16x8xf32>
    %c0_37 = arith.constant 0 : index
    %c0_38 = arith.constant 0 : index
    %c0_39 = arith.constant 0 : index
    %c40 = arith.constant 40 : index
    %11 = vector.load %arg5[%c0_37, %c0_38, %c0_39, %c40] : memref<8x2x16x72xf32, #tpu.memory_space<vmem>>, vector<8x2x16x8xf32>
    tpu.vector_store %arg5[%c0_37, %c0_38, %c0_39, %c40], %10 {strides = array<i32>} : memref<8x2x16x72xf32, #tpu.memory_space<vmem>>, vector<8x2x16x8xf32>,
    %c2_40 = arith.constant 2 : index
    %c0_41 = arith.constant 0 : index
    %c0_42 = arith.constant 0 : index
    %c0_43 = arith.constant 0 : index
    %12 = vector.load %arg1[%c2_40, %c0_41, %c0_42, %c0_43] : memref<10x2x18x8xf32, #tpu.memory_space<vmem>>, vector<8x2x16x8xf32>
    %c0_44 = arith.constant 0 : index
    %c0_45 = arith.constant 0 : index
    %c0_46 = arith.constant 0 : index
    %c48 = arith.constant 48 : index
    %13 = vector.load %arg5[%c0_44, %c0_45, %c0_46, %c48] : memref<8x2x16x72xf32, #tpu.memory_space<vmem>>, vector<8x2x16x8xf32>
    tpu.vector_store %arg5[%c0_44, %c0_45, %c0_46, %c48], %12 {strides = array<i32>} : memref<8x2x16x72xf32, #tpu.memory_space<vmem>>, vector<8x2x16x8xf32>,
    %c2_47 = arith.constant 2 : index
    %c0_48 = arith.constant 0 : index
    %c1_49 = arith.constant 1 : index
    %c0_50 = arith.constant 0 : index
    %14 = vector.load %arg1[%c2_47, %c0_48, %c1_49, %c0_50] : memref<10x2x18x8xf32, #tpu.memory_space<vmem>>, vector<8x2x16x8xf32>
    %c0_51 = arith.constant 0 : index
    %c0_52 = arith.constant 0 : index
    %c0_53 = arith.constant 0 : index
    %c56 = arith.constant 56 : index
    %15 = vector.load %arg5[%c0_51, %c0_52, %c0_53, %c56] : memref<8x2x16x72xf32, #tpu.memory_space<vmem>>, vector<8x2x16x8xf32>
    tpu.vector_store %arg5[%c0_51, %c0_52, %c0_53, %c56], %14 {strides = array<i32>} : memref<8x2x16x72xf32, #tpu.memory_space<vmem>>, vector<8x2x16x8xf32>,
    %c2_54 = arith.constant 2 : index
    %c0_55 = arith.constant 0 : index
    %c2_56 = arith.constant 2 : index
    %c0_57 = arith.constant 0 : index
    %16 = vector.load %arg1[%c2_54, %c0_55, %c2_56, %c0_57] : memref<10x2x18x8xf32, #tpu.memory_space<vmem>>, vector<8x2x16x8xf32>
    %c0_58 = arith.constant 0 : index
    %c0_59 = arith.constant 0 : index
    %c0_60 = arith.constant 0 : index
    %c64 = arith.constant 64 : index
    %17 = vector.load %arg5[%c0_58, %c0_59, %c0_60, %c64] : memref<8x2x16x72xf32, #tpu.memory_space<vmem>>, vector<8x2x16x8xf32>
    tpu.vector_store %arg5[%c0_58, %c0_59, %c0_60, %c64], %16 {strides = array<i32>} : memref<8x2x16x72xf32, #tpu.memory_space<vmem>>, vector<8x2x16x8xf32>,
    %c0_61 = arith.constant 0 : index
    %c0_62 = arith.constant 0 : index
    %c0_63 = arith.constant 0 : index
    %c0_64 = arith.constant 0 : index
    %18 = vector.load %arg5[%c0_61, %c0_62, %c0_63, %c0_64] : memref<8x2x16x72xf32, #tpu.memory_space<vmem>>, vector<8x2x16x72xf32>
    %19 = vector.shape_cast %18 : vector<8x2x16x72xf32> to vector<256x72xf32>
    %c0_65 = arith.constant 0 : index
    %c0_66 = arith.constant 0 : index
    %20 = vector.load %arg2[%c0_65, %c0_66] : memref<72x128xf32, #tpu.memory_space<vmem>>, vector<72x128xf32>
    %cst = arith.constant dense<0.000000e+00> : vector<256x128xf32>
    %21 = tpu.matmul %19, %20, %cst {dimension_numbers = #tpu.dot_dimension_numbers<[1], [0], [0], [1], [0, 0, 1, 1], [], []>} : vector<256x72xf32>, vector<72x128xf32>, vector<256x128xf32> -> vector<256x128xf32>
    %c0_67 = arith.constant 0 : index
    %c0_68 = arith.constant 0 : index
    %22 = vector.load %arg3[%c0_67, %c0_68] : memref<1x128xf32, #tpu.memory_space<vmem>>, vector<1x128xf32>
    %23 = vector.broadcast %22 : vector<1x128xf32> to vector<256x128xf32>
    %24 = arith.addf %21, %23 : vector<256x128xf32>
    %25 = vector.shape_cast %24 : vector<256x128xf32> to vector<8x2x16x128xf32>
    %c0_69 = arith.constant 0 : index
    %c0_70 = arith.constant 0 : index
    %c0_71 = arith.constant 0 : index
    %c0_72 = arith.constant 0 : index
    %26 = vector.load %arg4[%c0_69, %c0_70, %c0_71, %c0_72] : memref<8x2x16x128xf32, #tpu.memory_space<vmem>>, vector<8x2x16x128xf32>
    tpu.vector_store %arg4[%c0_69, %c0_70, %c0_71, %c0_72], %25 {strides = array<i32>} : memref<8x2x16x128xf32, #tpu.memory_space<vmem>>, vector<8x2x16x128xf32>,
    return
  }
  func.func @transform_0(%arg0: i32) -> (i32, i32, i32, i32) {
    %c0_i32 = arith.constant 0 : i32
    %c0_i32_0 = arith.constant 0 : i32
    %c0_i32_1 = arith.constant 0 : i32
    %c0_i32_2 = arith.constant 0 : i32
    return %arg0, %c0_i32, %c0_i32_0, %c0_i32_1 : i32, i32, i32, i32
  }
  func.func @transform_1(%arg0: i32) -> (i32, i32) {
    %c0_i32 = arith.constant 0 : i32
    %c0_i32_0 = arith.constant 0 : i32
    %c0_i32_1 = arith.constant 0 : i32
    return %c0_i32, %c0_i32_0 : i32, i32
  }
  func.func @transform_2(%arg0: i32) -> (i32, i32) {
    %c0_i32 = arith.constant 0 : i32
    %c0_i32_0 = arith.constant 0 : i32
    %c0_i32_1 = arith.constant 0 : i32
    return %c0_i32, %c0_i32_0 : i32, i32
  }
  func.func @transform_3(%arg0: i32) -> (i32, i32, i32, i32) {
    %c0_i32 = arith.constant 0 : i32
    %c0_i32_0 = arith.constant 0 : i32
    %c0_i32_1 = arith.constant 0 : i32
    %c0_i32_2 = arith.constant 0 : i32
    return %arg0, %c0_i32, %c0_i32_0, %c0_i32_1 : i32, i32, i32, i32
  }
}

</mosaic_0001>

<llo_original>
// kernel: custom_conv2d_forward.1
$region0: #{custom_conv2d_forward.1}
  #allocation0 [shape = 'u32[]', space=smem, size = 0x4, offset = 0x4, fixed_abs, tag = 'smem constant byte address 0x4 - core index']
  #allocation1 [shape = 'u32[144,128]{1,0:T(1,128)}', space=vmem, size = 0x12000, scoped, tag = 'internal scratch']
  #allocation2 [shape = 'f32[8,2,16,72]{3,2,1,0:T(8,128)}', space=vmem, size = 0x20000, scoped, tag = 'scratch operand']
  %s0 = inlined_call_operand.vmem [shape: f32[20,2,18,8], index: 0, kind: input, shape index: {}]
  %s1 = inlined_call_operand.vmem [shape: f32[72,128], index: 1, kind: input, shape index: {}]
  %s2 = inlined_call_operand.vmem [shape: f32[1,128], index: 2, kind: input, shape index: {}]
  %s3 = inlined_call_operand.vmem [shape: f32[16,2,16,128], index: 3, kind: output, shape index: {}]
  %s4 = sld [smem:[#allocation0]]
  $region45: #{custom_conv2d_forward.1} parent=0
    _
  %s6 = ssub.s32 1, %s4
  %s7 = scalar_select 0, %s6, %s4
  loop: start=0, step=1, limit=4
  $region2: #{custom_conv2d_forward.1} parent=0 // loop_pre_header
    _
  $region3: #{custom_conv2d_forward.1} parent=0 // loop_header
    %s9 = sphi 0, %s13
    %p10 = scmp.ge.s32.totalorder %s9, 4
    %s19 = sphi 0, %s21
    %s22 = sphi 0, %s19
    %s23 = sphi 0, %s22
    %s39 = sphi 0, %s23
    %s43 = sphi 0, %s43
    %s45 = sphi 0, %s43
    %s46 = sphi 0, %s45
    %s60 = sphi 0, %s46
    %s64 = sphi 0, %s64
    %s66 = sphi 0, %s64
    %s67 = sphi 0, %s66
    %s81 = sphi 0, %s67
    %s87 = sphi 0, %s89
    %s90 = sphi 0, %s87
    %s91 = sphi 0, %s90
    %s107 = sphi 0, %s91
  $region4: #{custom_conv2d_forward.1} parent=0 // loop_header_branch
    %12 = sbr.rel (%p10) target = $region8
  $region5: #{custom_conv2d_forward.1} parent=0 // loop_body
    %s14 = ssub.s32 %s9, 1
    %s15 = ssub.s32 %s9, 2
    %s16 = sadd.s32 %s9, 1
    %s17 = ssub.s32 %s9, %s16
    %p18 = scmp.eq.s32.totalorder %s17, 0
    %s20 = sadd.s32 %s19, 1
    %s21 = scalar_select %p18, %s19, %s20
    %p24 = pneg %p18
    %p25 = scmp.eq.s32.totalorder %s9, 1
    %p26 = por %p24, %p25
    %p27 = scmp.ne.s32.totalorder %s19, %s22
    %p28 = scmp.eq.s32.totalorder %s9, 0
    %p29 = por %p27, %p28
    %p30 = scmp.ne.s32.totalorder %s19, %s22
    %p31 = scmp.eq.s32.totalorder %s14, 1
    %p32 = por %p30, %p31
    %p33 = scmp.ne.s32.totalorder %s22, %s23
    %p34 = scmp.eq.s32.totalorder %s14, 0
    %p35 = por %p33, %p34
    %p36 = scmp.ne.s32.totalorder %s22, %s23
    %p37 = scmp.eq.s32.totalorder %s15, 1
    %p38 = por %p36, %p37
    %p40 = scmp.ne.s32.totalorder %s23, %s39
    %p41 = scmp.eq.s32.totalorder %s15, 0
    %p42 = por %p40, %p41
    %s44 = sadd.s32 %s43, 1
    %p47 = scmp.eq.s32.totalorder %s9, 1
    %p48 = scmp.ne.s32.totalorder %s43, %s45
    %p49 = scmp.eq.s32.totalorder %s9, 0
    %p50 = por %p48, %p49
    %p51 = scmp.ne.s32.totalorder %s43, %s45
    %p52 = scmp.eq.s32.totalorder %s14, 1
    %p53 = por %p51, %p52
    %p54 = scmp.ne.s32.totalorder %s45, %s46
    %p55 = scmp.eq.s32.totalorder %s14, 0
    %p56 = por %p54, %p55
    %p57 = scmp.ne.s32.totalorder %s45, %s46
    %p58 = scmp.eq.s32.totalorder %s15, 1
    %p59 = por %p57, %p58
    %p61 = scmp.ne.s32.totalorder %s46, %s60
    %p62 = scmp.eq.s32.totalorder %s15, 0
    %p63 = por %p61, %p62
    %s65 = sadd.s32 %s64, 1
    %p68 = scmp.eq.s32.totalorder %s9, 1
    %p69 = scmp.ne.s32.totalorder %s64, %s66
    %p70 = scmp.eq.s32.totalorder %s9, 0
    %p71 = por %p69, %p70
    %p72 = scmp.ne.s32.totalorder %s64, %s66
    %p73 = scmp.eq.s32.totalorder %s14, 1
    %p74 = por %p72, %p73
    %p75 = scmp.ne.s32.totalorder %s66, %s67
    %p76 = scmp.eq.s32.totalorder %s14, 0
    %p77 = por %p75, %p76
    %p78 = scmp.ne.s32.totalorder %s66, %s67
    %p79 = scmp.eq.s32.totalorder %s15, 1
    %p80 = por %p78, %p79
    %p82 = scmp.ne.s32.totalorder %s67, %s81
    %p83 = scmp.eq.s32.totalorder %s15, 0
    %p84 = por %p82, %p83
    %s85 = ssub.s32 %s9, %s16
    %p86 = scmp.eq.s32.totalorder %s85, 0
    %s88 = sadd.s32 %s87, 1
    %s89 = scalar_select %p86, %s87, %s88
    %p92 = pneg %p86
    %p93 = scmp.eq.s32.totalorder %s9, 1
    %p94 = por %p92, %p93
    %p95 = scmp.ne.s32.totalorder %s87, %s90
    %p96 = scmp.eq.s32.totalorder %s9, 0
    %p97 = por %p95, %p96
    %p98 = scmp.ne.s32.totalorder %s87, %s90
    %p99 = scmp.eq.s32.totalorder %s14, 1
    %p100 = por %p98, %p99
    %p101 = scmp.ne.s32.totalorder %s90, %s91
    %p102 = scmp.eq.s32.totalorder %s14, 0
    %p103 = por %p101, %p102
    %p104 = scmp.ne.s32.totalorder %s90, %s91
    %p105 = scmp.eq.s32.totalorder %s15, 1
    %p106 = por %p104, %p105
    %p108 = scmp.ne.s32.totalorder %s91, %s107
    %p109 = scmp.eq.s32.totalorder %s15, 0
    %p110 = por %p108, %p109
    %p111 = scmp.le.s32.totalorder 1, %s9
    %p112 = scmp.lt.s32.totalorder %s9, 3
    %p113 = pnand %p111, %p112
    %p114 = pneg %p113
    // Predicated region
    $region9: #{custom_conv2d_forward.1} parent=5 // pred_check
      _
    $region10: #{custom_conv2d_forward.1} parent=5 // pred_check_branch
      %116 = sbr.rel (%p113) target = $region12
    $region11: #{custom_conv2d_forward.1} parent=5 // pred_region
      %s117 = ssub.s32 %s9, 1
      // Predicated region
      $region13: #{custom_conv2d_forward.1} parent=11 // pred_check
        %p118 = pneg %p56
      $region14: #{custom_conv2d_forward.1} parent=11 // pred_check_branch
        %120 = sbr.rel (%p118) target = $region16
      $region15: #{custom_conv2d_forward.1} parent=11 // pred_region
        _
      $region16: #{custom_conv2d_forward.1} parent=11 // pred_fallthru
        _
      // Predicated region
      $region17: #{custom_conv2d_forward.1} parent=11 // pred_check
        %p121 = pneg %p77
      $region18: #{custom_conv2d_forward.1} parent=11 // pred_check_branch
        %123 = sbr.rel (%p121) target = $region20
      $region19: #{custom_conv2d_forward.1} parent=11 // pred_region
        _
      $region20: #{custom_conv2d_forward.1} parent=11 // pred_fallthru
        _
    $region12: #{custom_conv2d_forward.1} parent=5 // pred_fallthru
      _
    %p124 = scmp.lt.s32.totalorder %s9, 2
    // Predicated region
    $region21: #{custom_conv2d_forward.1} parent=5 // pred_check
      %p125 = pneg %p124
    $region22: #{custom_conv2d_forward.1} parent=5 // pred_check_branch
      %127 = sbr.rel (%p125) target = $region24
    $region23: #{custom_conv2d_forward.1} parent=5 // pred_region
      // Predicated region
      $region25: #{custom_conv2d_forward.1} parent=23 // pred_check
        %p128 = pneg %p29
      $region26: #{custom_conv2d_forward.1} parent=23 // pred_check_branch
        %130 = sbr.rel (%p128) target = $region28
      $region27: #{custom_conv2d_forward.1} parent=23 // pred_region
        %s131 = smul.u32 10, %s9
        %p132 = scmp.lt.s32.totalorder %s131, 19
        %s133 = scalar_select %p132, %s131, 19
        %s134 = smul.addr %s133, 6
        %s135 = smul.addr %s134, 8
        %s136 = scalar_lea.vmem %s0, %s135
        %s137 = smul.u32 10, %s9
      $region28: #{custom_conv2d_forward.1} parent=23 // pred_fallthru
        _
    $region24: #{custom_conv2d_forward.1} parent=5 // pred_fallthru
      _
    %p138 = scmp.le.s32.totalorder 1, %s9
    %p139 = scmp.lt.s32.totalorder %s9, 3
    %p140 = pnand %p138, %p139
    %p141 = pneg %p140
    // Predicated region
    $region29: #{custom_conv2d_forward.1} parent=5 // pred_check
      _
    $region30: #{custom_conv2d_forward.1} parent=5 // pred_check_branch
      %143 = sbr.rel (%p140) target = $region32
    $region31: #{custom_conv2d_forward.1} parent=5 // pred_region
      %s144 = ssub.s32 %s9, 1
      %s145 = smul.u32 10, %s14
      %p146 = scmp.lt.s32.totalorder %s145, 19
      %s147 = scalar_select %p146, %s145, 19
      %s148 = smul.addr %s147, 6
      %s149 = smul.addr %s148, 8
      %s150 = scalar_lea.vmem %s0, %s149
      %p151 = pneg %p35
      %p152 = pneg %p32
      %p153 = pneg %p56
      %p154 = pneg %p53
      %p155 = pneg %p77
      %p156 = pneg %p74
      %p157 = pneg %p103
      %p158 = pneg %p100
      %s159 = smul.u32 8, %s14
      %p160 = scmp.lt.s32.totalorder %s159, 15
      %s161 = scalar_select %p160, %s159, 15
      %s162 = smul.addr %s161, 4
      %s163 = smul.addr %s162, 8
      %s164 = scalar_lea.vmem %s3, %s163
      %s165 = smul.u32 10, %s14
      %p166 = scmp.lt.s32.totalorder %s165, 19
      %s167 = scalar_select %p166, %s165, 19
      %s168 = smul.addr %s167, 6
      %s169 = smul.addr %s168, 8
      %s170 = scalar_lea.vmem %s0, %s169
      %s171 = smul.u32 10, %s14
      %s172 = smul.u32 8, %s14
      %p173 = scmp.lt.s32.totalorder %s172, 15
      %s174 = scalar_select %p173, %s172, 15
      %s175 = smul.addr %s174, 4
      %s176 = smul.addr %s175, 8
      %s177 = scalar_lea.vmem %s3, %s176
      %s178 = smul.u32 8, %s14
      %v179 = vld [vmem:[%s170] sm:$0xff]
      %v180 = vld [vmem:[%s170 + $0x8] sm:$0xff]
      %v181 = vld [vmem:[%s170 + $0x18] sm:$0xff]
      %v182 = vld [vmem:[%s170 + $0x20] sm:$0xff]
      %v183 = vld [vmem:[%s170 + $0x30] sm:$0xff]
      %v184 = vld [vmem:[%s170 + $0x38] sm:$0xff]
      %v185 = vld [vmem:[%s170 + $0x48] sm:$0xff]
      %v186 = vld [vmem:[%s170 + $0x50] sm:$0xff]
      %v187 = vld [vmem:[%s170 + $0x60] sm:$0xff]
      %v188 = vld [vmem:[%s170 + $0x68] sm:$0xff]
      %v189 = vld [vmem:[%s170 + $0x78] sm:$0xff]
      %v190 = vld [vmem:[%s170 + $0x80] sm:$0xff]
      %v191 = vld [vmem:[%s170 + $0x90] sm:$0xff]
      %v192 = vld [vmem:[%s170 + $0x98] sm:$0xff]
      %v193 = vld [vmem:[%s170 + $0xa8] sm:$0xff]
      %v194 = vld [vmem:[%s170 + $0xb0] sm:$0xff]
      %v195 = vld [vmem:[%s170 + $0xc0] sm:$0xff]
      %v196 = vld [vmem:[%s170 + $0xc8] sm:$0xff]
      %v197 = vld [vmem:[%s170 + $0xd8] sm:$0xff]
      %v198 = vld [vmem:[%s170 + $0xe0] sm:$0xff]
      %v199 = vld [vmem:[%s170 + $0xf0] sm:$0xff]
      %v200 = vld [vmem:[%s170 + $0xf8] sm:$0xff]
      %v201 = vld [vmem:[%s170 + $0x108] sm:$0xff]
      %v202 = vld [vmem:[%s170 + $0x110] sm:$0xff]
      %v203 = vld [vmem:[%s170 + $0x120] sm:$0xff]
      %v204 = vld [vmem:[%s170 + $0x128] sm:$0xff]
      %v205 = vld [vmem:[%s170 + $0x138] sm:$0xff]
      %v206 = vld [vmem:[%s170 + $0x140] sm:$0xff]
      %v207 = vld [vmem:[%s170 + $0x150] sm:$0xff]
      %v208 = vld [vmem:[%s170 + $0x158] sm:$0xff]
      %v209 = vld [vmem:[%s170 + $0x168] sm:$0xff]
      %v210 = vld [vmem:[%s170 + $0x170] sm:$0xff]
      %vm211 = vcmask 64512
      %212 = vst.msk [vmem:[#allocation2] sm:$0xff] %vm211, %v179
      %213 = vst.msk [vmem:[#allocation2 + $0x8] sm:$0xff] %vm211, %v180
      %214 = vst.msk [vmem:[#allocation2 + $0x10] sm:$0xff] %vm211, %v181
      %215 = vst.msk [vmem:[#allocation2 + $0x18] sm:$0xff] %vm211, %v182
      %216 = vst.msk [vmem:[#allocation2 + $0x20] sm:$0xff] %vm211, %v183
      %217 = vst.msk [vmem:[#allocation2 + $0x28] sm:$0xff] %vm211, %v184
      %218 = vst.msk [vmem:[#allocation2 + $0x30] sm:$0xff] %vm211, %v185
      %219 = vst.msk [vmem:[#allocation2 + $0x38] sm:$0xff] %vm211, %v186
      %220 = vst.msk [vmem:[#allocation2 + $0x40] sm:$0xff] %vm211, %v187
      %221 = vst.msk [vmem:[#allocation2 + $0x48] sm:$0xff] %vm211, %v188
      %222 = vst.msk [vmem:[#allocation2 + $0x50] sm:$0xff] %vm211, %v189
      %223 = vst.msk [vmem:[#allocation2 + $0x58] sm:$0xff] %vm211, %v190
      %224 = vst.msk [vmem:[#allocation2 + $0x60] sm:$0xff] %vm211, %v191
      %225 = vst.msk [vmem:[#allocation2 + $0x68] sm:$0xff] %vm211, %v192
      %226 = vst.msk [vmem:[#allocation2 + $0x70] sm:$0xff] %vm211, %v193
      %227 = vst.msk [vmem:[#allocation2 + $0x78] sm:$0xff] %vm211, %v194
      %228 = vst.msk [vmem:[#allocation2 + $0x80] sm:$0xff] %vm211, %v195
      %229 = vst.msk [vmem:[#allocation2 + $0x88] sm:$0xff] %vm211, %v196
      %230 = vst.msk [vmem:[#allocation2 + $0x90] sm:$0xff] %vm211, %v197
      %231 = vst.msk [vmem:[#allocation2 + $0x98] sm:$0xff] %vm211, %v198
      %232 = vst.msk [vmem:[#allocation2 + $0xa0] sm:$0xff] %vm211, %v199
      %233 = vst.msk [vmem:[#allocation2 + $0xa8] sm:$0xff] %vm211, %v200
      %234 = vst.msk [vmem:[#allocation2 + $0xb0] sm:$0xff] %vm211, %v201
      %235 = vst.msk [vmem:[#allocation2 + $0xb8] sm:$0xff] %vm211, %v202
      %236 = vst.msk [vmem:[#allocation2 + $0xc0] sm:$0xff] %vm211, %v203
      %237 = vst.msk [vmem:[#allocation2 + $0xc8] sm:$0xff] %vm211, %v204
      %238 = vst.msk [vmem:[#allocation2 + $0xd0] sm:$0xff] %vm211, %v205
      %239 = vst.msk [vmem:[#allocation2 + $0xd8] sm:$0xff] %vm211, %v206
      %240 = vst.msk [vmem:[#allocation2 + $0xe0] sm:$0xff] %vm211, %v207
      %241 = vst.msk [vmem:[#allocation2 + $0xe8] sm:$0xff] %vm211, %v208
      %242 = vst.msk [vmem:[#allocation2 + $0xf0] sm:$0xff] %vm211, %v209
      %243 = vst.msk [vmem:[#allocation2 + $0xf8] sm:$0xff] %vm211, %v210
      %v244 = vld [vmem:[%s170 + $0x1] sm:$0xff]
      %v245 = vld [vmem:[%s170 + $0x9] sm:$0xff]
      %v246 = vld [vmem:[%s170 + $0x19] sm:$0xff]
      %v247 = vld [vmem:[%s170 + $0x21] sm:$0xff]
      %v248 = vld [vmem:[%s170 + $0x31] sm:$0xff]
      %v249 = vld [vmem:[%s170 + $0x39] sm:$0xff]
      %v250 = vld [vmem:[%s170 + $0x49] sm:$0xff]
      %v251 = vld [vmem:[%s170 + $0x51] sm:$0xff]
      %v252 = vld [vmem:[%s170 + $0x61] sm:$0xff]
      %v253 = vld [vmem:[%s170 + $0x69] sm:$0xff]
      %v254 = vld [vmem:[%s170 + $0x79] sm:$0xff]
      %v255 = vld [vmem:[%s170 + $0x81] sm:$0xff]
      %v256 = vld [vmem:[%s170 + $0x91] sm:$0xff]
      %v257 = vld [vmem:[%s170 + $0x99] sm:$0xff]
      %v258 = vld [vmem:[%s170 + $0xa9] sm:$0xff]
      %v259 = vld [vmem:[%s170 + $0xb1] sm:$0xff]
      %v260 = vld [vmem:[%s170 + $0xc1] sm:$0xff]
      %v261 = vld [vmem:[%s170 + $0xc9] sm:$0xff]
      %v262 = vld [vmem:[%s170 + $0xd9] sm:$0xff]
      %v263 = vld [vmem:[%s170 + $0xe1] sm:$0xff]
      %v264 = vld [vmem:[%s170 + $0xf1] sm:$0xff]
      %v265 = vld [vmem:[%s170 + $0xf9] sm:$0xff]
      %v266 = vld [vmem:[%s170 + $0x109] sm:$0xff]
      %v267 = vld [vmem:[%s170 + $0x111] sm:$0xff]
      %v268 = vld [vmem:[%s170 + $0x121] sm:$0xff]
      %v269 = vld [vmem:[%s170 + $0x129] sm:$0xff]
      %v270 = vld [vmem:[%s170 + $0x139] sm:$0xff]
      %v271 = vld [vmem:[%s170 + $0x141] sm:$0xff]
      %v272 = vld [vmem:[%s170 + $0x151] sm:$0xff]
      %v273 = vld [vmem:[%s170 + $0x159] sm:$0xff]
      %v274 = vld [vmem:[%s170 + $0x169] sm:$0xff]
      %v275 = vld [vmem:[%s170 + $0x171] sm:$0xff]
      %308 = vrot.lane.b32.xlu0 %v244, 8
      %v309 = vpop.permute.xlu0 %308
      %310 = vrot.lane.b32.xlu0 %v245, 8
      %v311 = vpop.permute.xlu0 %310
      %312 = vrot.lane.b32.xlu0 %v246, 8
      %v313 = vpop.permute.xlu0 %312
      %314 = vrot.lane.b32.xlu0 %v247, 8
      %v315 = vpop.permute.xlu0 %314
      %316 = vrot.lane.b32.xlu0 %v248, 8
      %v317 = vpop.permute.xlu0 %316
      %318 = vrot.lane.b32.xlu0 %v249, 8
      %v319 = vpop.permute.xlu0 %318
      %320 = vrot.lane.b32.xlu0 %v250, 8
      %v321 = vpop.permute.xlu0 %320
      %322 = vrot.lane.b32.xlu0 %v251, 8
      %v323 = vpop.permute.xlu0 %322
      %324 = vrot.lane.b32.xlu0 %v252, 8
      %v325 = vpop.permute.xlu0 %324
      %326 = vrot.lane.b32.xlu0 %v253, 8
      %v327 = vpop.permute.xlu0 %326
      %328 = vrot.lane.b32.xlu0 %v254, 8
      %v329 = vpop.permute.xlu0 %328
      %330 = vrot.lane.b32.xlu0 %v255, 8
      %v331 = vpop.permute.xlu0 %330
      %332 = vrot.lane.b32.xlu0 %v256, 8
      %v333 = vpop.permute.xlu0 %332
      %334 = vrot.lane.b32.xlu0 %v257, 8
      %v335 = vpop.permute.xlu0 %334
      %336 = vrot.lane.b32.xlu0 %v258, 8
      %v337 = vpop.permute.xlu0 %336
      %338 = vrot.lane.b32.xlu0 %v259, 8
      %v339 = vpop.permute.xlu0 %338
      %340 = vrot.lane.b32.xlu0 %v260, 8
      %v341 = vpop.permute.xlu0 %340
      %342 = vrot.lane.b32.xlu0 %v261, 8
      %v343 = vpop.permute.xlu0 %342
      %344 = vrot.lane.b32.xlu0 %v262, 8
      %v345 = vpop.permute.xlu0 %344
      %346 = vrot.lane.b32.xlu0 %v263, 8
      %v347 = vpop.permute.xlu0 %346
      %348 = vrot.lane.b32.xlu0 %v264, 8
      %v349 = vpop.permute.xlu0 %348
      %350 = vrot.lane.b32.xlu0 %v265, 8
      %v351 = vpop.permute.xlu0 %350
      %352 = vrot.lane.b32.xlu0 %v266, 8
      %v353 = vpop.permute.xlu0 %352
      %354 = vrot.lane.b32.xlu0 %v267, 8
      %v355 = vpop.permute.xlu0 %354
      %356 = vrot.lane.b32.xlu0 %v268, 8
      %v357 = vpop.permute.xlu0 %356
      %358 = vrot.lane.b32.xlu0 %v269, 8
      %v359 = vpop.permute.xlu0 %358
      %360 = vrot.lane.b32.xlu0 %v270, 8
      %v361 = vpop.permute.xlu0 %360
      %362 = vrot.lane.b32.xlu0 %v271, 8
      %v363 = vpop.permute.xlu0 %362
      %364 = vrot.lane.b32.xlu0 %v272, 8
      %v365 = vpop.permute.xlu0 %364
      %366 = vrot.lane.b32.xlu0 %v273, 8
      %v367 = vpop.permute.xlu0 %366
      %368 = vrot.lane.b32.xlu0 %v274, 8
      %v369 = vpop.permute.xlu0 %368
      %370 = vrot.lane.b32.xlu0 %v275, 8
      %v371 = vpop.permute.xlu0 %370
      %vm404 = vcmask 130112
      %405 = vst.msk [vmem:[#allocation2] sm:$0xff] %vm404, %v309
      %406 = vst.msk [vmem:[#allocation2 + $0x8] sm:$0xff] %vm404, %v311
      %407 = vst.msk [vmem:[#allocation2 + $0x10] sm:$0xff] %vm404, %v313
      %408 = vst.msk [vmem:[#allocation2 + $0x18] sm:$0xff] %vm404, %v315
      %409 = vst.msk [vmem:[#allocation2 + $0x20] sm:$0xff] %vm404, %v317
      %410 = vst.msk [vmem:[#allocation2 + $0x28] sm:$0xff] %vm404, %v319
      %411 = vst.msk [vmem:[#allocation2 + $0x30] sm:$0xff] %vm404, %v321
      %412 = vst.msk [vmem:[#allocation2 + $0x38] sm:$0xff] %vm404, %v323
      %413 = vst.msk [vmem:[#allocation2 + $0x40] sm:$0xff] %vm404, %v325
      %414 = vst.msk [vmem:[#allocation2 + $0x48] sm:$0xff] %vm404, %v327
      %415 = vst.msk [vmem:[#allocation2 + $0x50] sm:$0xff] %vm404, %v329
      %416 = vst.msk [vmem:[#allocation2 + $0x58] sm:$0xff] %vm404, %v331
      %417 = vst.msk [vmem:[#allocation2 + $0x60] sm:$0xff] %vm404, %v333
      %418 = vst.msk [vmem:[#allocation2 + $0x68] sm:$0xff] %vm404, %v335
      %419 = vst.msk [vmem:[#allocation2 + $0x70] sm:$0xff] %vm404, %v337
      %420 = vst.msk [vmem:[#allocation2 + $0x78] sm:$0xff] %vm404, %v339
      %421 = vst.msk [vmem:[#allocation2 + $0x80] sm:$0xff] %vm404, %v341
      %422 = vst.msk [vmem:[#allocation2 + $0x88] sm:$0xff] %vm404, %v343
      %423 = vst.msk [vmem:[#allocation2 + $0x90] sm:$0xff] %vm404, %v345
      %424 = vst.msk [vmem:[#allocation2 + $0x98] sm:$0xff] %vm404, %v347
      %425 = vst.msk [vmem:[#allocation2 + $0xa0] sm:$0xff] %vm404, %v349
      %426 = vst.msk [vmem:[#allocation2 + $0xa8] sm:$0xff] %vm404, %v351
      %427 = vst.msk [vmem:[#allocation2 + $0xb0] sm:$0xff] %vm404, %v353
      %428 = vst.msk [vmem:[#allocation2 + $0xb8] sm:$0xff] %vm404, %v355
      %429 = vst.msk [vmem:[#allocation2 + $0xc0] sm:$0xff] %vm404, %v357
      %430 = vst.msk [vmem:[#allocation2 + $0xc8] sm:$0xff] %vm404, %v359
      %431 = vst.msk [vmem:[#allocation2 + $0xd0] sm:$0xff] %vm404, %v361
      %432 = vst.msk [vmem:[#allocation2 + $0xd8] sm:$0xff] %vm404, %v363
      %433 = vst.msk [vmem:[#allocation2 + $0xe0] sm:$0xff] %vm404, %v365
      %434 = vst.msk [vmem:[#allocation2 + $0xe8] sm:$0xff] %vm404, %v367
      %435 = vst.msk [vmem:[#allocation2 + $0xf0] sm:$0xff] %vm404, %v369
      %436 = vst.msk [vmem:[#allocation2 + $0xf8] sm:$0xff] %vm404, %v371
      %v437 = vld [vmem:[%s170 + $0x2] sm:$0xff]
      %v438 = vld [vmem:[%s170 + $0xa] sm:$0xff]
      %v439 = vld [vmem:[%s170 + $0x1a] sm:$0xff]
      %v440 = vld [vmem:[%s170 + $0x22] sm:$0xff]
      %v441 = vld [vmem:[%s170 + $0x32] sm:$0xff]
      %v442 = vld [vmem:[%s170 + $0x3a] sm:$0xff]
      %v443 = vld [vmem:[%s170 + $0x4a] sm:$0xff]
      %v444 = vld [vmem:[%s170 + $0x52] sm:$0xff]
      %v445 = vld [vmem:[%s170 + $0x62] sm:$0xff]
      %v446 = vld [vmem:[%s170 + $0x6a] sm:$0xff]
      %v447 = vld [vmem:[%s170 + $0x7a] sm:$0xff]
      %v448 = vld [vmem:[%s170 + $0x82] sm:$0xff]
      %v449 = vld [vmem:[%s170 + $0x92] sm:$0xff]
      %v450 = vld [vmem:[%s170 + $0x9a] sm:$0xff]
      %v451 = vld [vmem:[%s170 + $0xaa] sm:$0xff]
      %v452 = vld [vmem:[%s170 + $0xb2] sm:$0xff]
      %v453 = vld [vmem:[%s170 + $0xc2] sm:$0xff]
      %v454 = vld [vmem:[%s170 + $0xca] sm:$0xff]
      %v455 = vld [vmem:[%s170 + $0xda] sm:$0xff]
      %v456 = vld [vmem:[%s170 + $0xe2] sm:$0xff]
      %v457 = vld [vmem:[%s170 + $0xf2] sm:$0xff]
      %v458 = vld [vmem:[%s170 + $0xfa] sm:$0xff]
      %v459 = vld [vmem:[%s170 + $0x10a] sm:$0xff]
      %v460 = vld [vmem:[%s170 + $0x112] sm:$0xff]
      %v461 = vld [vmem:[%s170 + $0x122] sm:$0xff]
      %v462 = vld [vmem:[%s170 + $0x12a] sm:$0xff]
      %v463 = vld [vmem:[%s170 + $0x13a] sm:$0xff]
      %v464 = vld [vmem:[%s170 + $0x142] sm:$0xff]
      %v465 = vld [vmem:[%s170 + $0x152] sm:$0xff]
      %v466 = vld [vmem:[%s170 + $0x15a] sm:$0xff]
      %v467 = vld [vmem:[%s170 + $0x16a] sm:$0xff]
      %v468 = vld [vmem:[%s170 + $0x172] sm:$0xff]
      %501 = vrot.lane.b32.xlu0 %v437, 16
      %v502 = vpop.permute.xlu0 %501
      %503 = vrot.lane.b32.xlu0 %v438, 16
      %v504 = vpop.permute.xlu0 %503
      %505 = vrot.lane.b32.xlu0 %v439, 16
      %v506 = vpop.permute.xlu0 %505
      %507 = vrot.lane.b32.xlu0 %v440, 16
      %v508 = vpop.permute.xlu0 %507
      %509 = vrot.lane.b32.xlu0 %v441, 16
      %v510 = vpop.permute.xlu0 %509
      %511 = vrot.lane.b32.xlu0 %v442, 16
      %v512 = vpop.permute.xlu0 %511
      %513 = vrot.lane.b32.xlu0 %v443, 16
      %v514 = vpop.permute.xlu0 %513
      %515 = vrot.lane.b32.xlu0 %v444, 16
      %v516 = vpop.permute.xlu0 %515
      %517 = vrot.lane.b32.xlu0 %v445, 16
      %v518 = vpop.permute.xlu0 %517
      %519 = vrot.lane.b32.xlu0 %v446, 16
      %v520 = vpop.permute.xlu0 %519
      %521 = vrot.lane.b32.xlu0 %v447, 16
      %v522 = vpop.permute.xlu0 %521
      %523 = vrot.lane.b32.xlu0 %v448, 16
      %v524 = vpop.permute.xlu0 %523
      %525 = vrot.lane.b32.xlu0 %v449, 16
      %v526 = vpop.permute.xlu0 %525
      %527 = vrot.lane.b32.xlu0 %v450, 16
      %v528 = vpop.permute.xlu0 %527
      %529 = vrot.lane.b32.xlu0 %v451, 16
      %v530 = vpop.permute.xlu0 %529
      %531 = vrot.lane.b32.xlu0 %v452, 16
      %v532 = vpop.permute.xlu0 %531
      %533 = vrot.lane.b32.xlu0 %v453, 16
      %v534 = vpop.permute.xlu0 %533
      %535 = vrot.lane.b32.xlu0 %v454, 16
      %v536 = vpop.permute.xlu0 %535
      %537 = vrot.lane.b32.xlu0 %v455, 16
      %v538 = vpop.permute.xlu0 %537
      %539 = vrot.lane.b32.xlu0 %v456, 16
      %v540 = vpop.permute.xlu0 %539
      %541 = vrot.lane.b32.xlu0 %v457, 16
      %v542 = vpop.permute.xlu0 %541
      %543 = vrot.lane.b32.xlu0 %v458, 16
      %v544 = vpop.permute.xlu0 %543
      %545 = vrot.lane.b32.xlu0 %v459, 16
      %v546 = vpop.permute.xlu0 %545
      %547 = vrot.lane.b32.xlu0 %v460, 16
      %v548 = vpop.permute.xlu0 %547
      %549 = vrot.lane.b32.xlu0 %v461, 16
      %v550 = vpop.permute.xlu0 %549
      %551 = vrot.lane.b32.xlu0 %v462, 16
      %v552 = vpop.permute.xlu0 %551
      %553 = vrot.lane.b32.xlu0 %v463, 16
      %v554 = vpop.permute.xlu0 %553
      %555 = vrot.lane.b32.xlu0 %v464, 16
      %v556 = vpop.permute.xlu0 %555
      %557 = vrot.lane.b32.xlu0 %v465, 16
      %v558 = vpop.permute.xlu0 %557
      %559 = vrot.lane.b32.xlu0 %v466, 16
      %v560 = vpop.permute.xlu0 %559
      %561 = vrot.lane.b32.xlu0 %v467, 16
      %v562 = vpop.permute.xlu0 %561
      %563 = vrot.lane.b32.xlu0 %v468, 16
      %v564 = vpop.permute.xlu0 %563
      %vm597 = vcmask 195712
      %598 = vst.msk [vmem:[#allocation2] sm:$0xff] %vm597, %v502
      %599 = vst.msk [vmem:[#allocation2 + $0x8] sm:$0xff] %vm597, %v504
      %600 = vst.msk [vmem:[#allocation2 + $0x10] sm:$0xff] %vm597, %v506
      %601 = vst.msk [vmem:[#allocation2 + $0x18] sm:$0xff] %vm597, %v508
      %602 = vst.msk [vmem:[#allocation2 + $0x20] sm:$0xff] %vm597, %v510
      %603 = vst.msk [vmem:[#allocation2 + $0x28] sm:$0xff] %vm597, %v512
      %604 = vst.msk [vmem:[#allocation2 + $0x30] sm:$0xff] %vm597, %v514
      %605 = vst.msk [vmem:[#allocation2 + $0x38] sm:$0xff] %vm597, %v516
      %606 = vst.msk [vmem:[#allocation2 + $0x40] sm:$0xff] %vm597, %v518
      %607 = vst.msk [vmem:[#allocation2 + $0x48] sm:$0xff] %vm597, %v520
      %608 = vst.msk [vmem:[#allocation2 + $0x50] sm:$0xff] %vm597, %v522
      %609 = vst.msk [vmem:[#allocation2 + $0x58] sm:$0xff] %vm597, %v524
      %610 = vst.msk [vmem:[#allocation2 + $0x60] sm:$0xff] %vm597, %v526
      %611 = vst.msk [vmem:[#allocation2 + $0x68] sm:$0xff] %vm597, %v528
      %612 = vst.msk [vmem:[#allocation2 + $0x70] sm:$0xff] %vm597, %v530
      %613 = vst.msk [vmem:[#allocation2 + $0x78] sm:$0xff] %vm597, %v532
      %614 = vst.msk [vmem:[#allocation2 + $0x80] sm:$0xff] %vm597, %v534
      %615 = vst.msk [vmem:[#allocation2 + $0x88] sm:$0xff] %vm597, %v536
      %616 = vst.msk [vmem:[#allocation2 + $0x90] sm:$0xff] %vm597, %v538
      %617 = vst.msk [vmem:[#allocation2 + $0x98] sm:$0xff] %vm597, %v540
      %618 = vst.msk [vmem:[#allocation2 + $0xa0] sm:$0xff] %vm597, %v542
      %619 = vst.msk [vmem:[#allocation2 + $0xa8] sm:$0xff] %vm597, %v544
      %620 = vst.msk [vmem:[#allocation2 + $0xb0] sm:$0xff] %vm597, %v546
      %621 = vst.msk [vmem:[#allocation2 + $0xb8] sm:$0xff] %vm597, %v548
      %622 = vst.msk [vmem:[#allocation2 + $0xc0] sm:$0xff] %vm597, %v550
      %623 = vst.msk [vmem:[#allocation2 + $0xc8] sm:$0xff] %vm597, %v552
      %624 = vst.msk [vmem:[#allocation2 + $0xd0] sm:$0xff] %vm597, %v554
      %625 = vst.msk [vmem:[#allocation2 + $0xd8] sm:$0xff] %vm597, %v556
      %626 = vst.msk [vmem:[#allocation2 + $0xe0] sm:$0xff] %vm597, %v558
      %627 = vst.msk [vmem:[#allocation2 + $0xe8] sm:$0xff] %vm597, %v560
      %628 = vst.msk [vmem:[#allocation2 + $0xf0] sm:$0xff] %vm597, %v562
      %629 = vst.msk [vmem:[#allocation2 + $0xf8] sm:$0xff] %vm597, %v564
      %s630 = scalar_lea.vmem %s170, 48
      %v631 = vld [vmem:[%s630] sm:$0xff]
      %v632 = vld [vmem:[%s630 + $0x8] sm:$0xff]
      %v633 = vld [vmem:[%s630 + $0x18] sm:$0xff]
      %v634 = vld [vmem:[%s630 + $0x20] sm:$0xff]
      %v635 = vld [vmem:[%s630 + $0x30] sm:$0xff]
      %v636 = vld [vmem:[%s630 + $0x38] sm:$0xff]
      %v637 = vld [vmem:[%s630 + $0x48] sm:$0xff]
      %v638 = vld [vmem:[%s630 + $0x50] sm:$0xff]
      %v639 = vld [vmem:[%s630 + $0x60] sm:$0xff]
      %v640 = vld [vmem:[%s630 + $0x68] sm:$0xff]
      %v641 = vld [vmem:[%s630 + $0x78] sm:$0xff]
      %v642 = vld [vmem:[%s630 + $0x80] sm:$0xff]
      %v643 = vld [vmem:[%s630 + $0x90] sm:$0xff]
      %v644 = vld [vmem:[%s630 + $0x98] sm:$0xff]
      %v645 = vld [vmem:[%s630 + $0xa8] sm:$0xff]
      %v646 = vld [vmem:[%s630 + $0xb0] sm:$0xff]
      %v647 = vld [vmem:[%s630 + $0xc0] sm:$0xff]
      %v648 = vld [vmem:[%s630 + $0xc8] sm:$0xff]
      %v649 = vld [vmem:[%s630 + $0xd8] sm:$0xff]
      %v650 = vld [vmem:[%s630 + $0xe0] sm:$0xff]
      %v651 = vld [vmem:[%s630 + $0xf0] sm:$0xff]
      %v652 = vld [vmem:[%s630 + $0xf8] sm:$0xff]
      %v653 = vld [vmem:[%s630 + $0x108] sm:$0xff]
      %v654 = vld [vmem:[%s630 + $0x110] sm:$0xff]
      %v655 = vld [vmem:[%s630 + $0x120] sm:$0xff]
      %v656 = vld [vmem:[%s630 + $0x128] sm:$0xff]
      %v657 = vld [vmem:[%s630 + $0x138] sm:$0xff]
      %v658 = vld [vmem:[%s630 + $0x140] sm:$0xff]
      %v659 = vld [vmem:[%s630 + $0x150] sm:$0xff]
      %v660 = vld [vmem:[%s630 + $0x158] sm:$0xff]
      %v661 = vld [vmem:[%s630 + $0x168] sm:$0xff]
      %v662 = vld [vmem:[%s630 + $0x170] sm:$0xff]
      %695 = vrot.lane.b32.xlu0 %v631, 24
      %v696 = vpop.permute.xlu0 %695
      %697 = vrot.lane.b32.xlu0 %v632, 24
      %v698 = vpop.permute.xlu0 %697
      %699 = vrot.lane.b32.xlu0 %v633, 24
      %v700 = vpop.permute.xlu0 %699
      %701 = vrot.lane.b32.xlu0 %v634, 24
      %v702 = vpop.permute.xlu0 %701
      %703 = vrot.lane.b32.xlu0 %v635, 24
      %v704 = vpop.permute.xlu0 %703
      %705 = vrot.lane.b32.xlu0 %v636, 24
      %v706 = vpop.permute.xlu0 %705
      %707 = vrot.lane.b32.xlu0 %v637, 24
      %v708 = vpop.permute.xlu0 %707
      %709 = vrot.lane.b32.xlu0 %v638, 24
      %v710 = vpop.permute.xlu0 %709
      %711 = vrot.lane.b32.xlu0 %v639, 24
      %v712 = vpop.permute.xlu0 %711
      %713 = vrot.lane.b32.xlu0 %v640, 24
      %v714 = vpop.permute.xlu0 %713
      %715 = vrot.lane.b32.xlu0 %v641, 24
      %v716 = vpop.permute.xlu0 %715
      %717 = vrot.lane.b32.xlu0 %v642, 24
      %v718 = vpop.permute.xlu0 %717
      %719 = vrot.lane.b32.xlu0 %v643, 24
      %v720 = vpop.permute.xlu0 %719
      %721 = vrot.lane.b32.xlu0 %v644, 24
      %v722 = vpop.permute.xlu0 %721
      %723 = vrot.lane.b32.xlu0 %v645, 24
      %v724 = vpop.permute.xlu0 %723
      %725 = vrot.lane.b32.xlu0 %v646, 24
      %v726 = vpop.permute.xlu0 %725
      %727 = vrot.lane.b32.xlu0 %v647, 24
      %v728 = vpop.permute.xlu0 %727
      %729 = vrot.lane.b32.xlu0 %v648, 24
      %v730 = vpop.permute.xlu0 %729
      %731 = vrot.lane.b32.xlu0 %v649, 24
      %v732 = vpop.permute.xlu0 %731
      %733 = vrot.lane.b32.xlu0 %v650, 24
      %v734 = vpop.permute.xlu0 %733
      %735 = vrot.lane.b32.xlu0 %v651, 24
      %v736 = vpop.permute.xlu0 %735
      %737 = vrot.lane.b32.xlu0 %v652, 24
      %v738 = vpop.permute.xlu0 %737
      %739 = vrot.lane.b32.xlu0 %v653, 24
      %v740 = vpop.permute.xlu0 %739
      %741 = vrot.lane.b32.xlu0 %v654, 24
      %v742 = vpop.permute.xlu0 %741
      %743 = vrot.lane.b32.xlu0 %v655, 24
      %v744 = vpop.permute.xlu0 %743
      %745 = vrot.lane.b32.xlu0 %v656, 24
      %v746 = vpop.permute.xlu0 %745
      %747 = vrot.lane.b32.xlu0 %v657, 24
      %v748 = vpop.permute.xlu0 %747
      %749 = vrot.lane.b32.xlu0 %v658, 24
      %v750 = vpop.permute.xlu0 %749
      %751 = vrot.lane.b32.xlu0 %v659, 24
      %v752 = vpop.permute.xlu0 %751
      %753 = vrot.lane.b32.xlu0 %v660, 24
      %v754 = vpop.permute.xlu0 %753
      %755 = vrot.lane.b32.xlu0 %v661, 24
      %v756 = vpop.permute.xlu0 %755
      %757 = vrot.lane.b32.xlu0 %v662, 24
      %v758 = vpop.permute.xlu0 %757
      %vm791 = vcmask 261312
      %792 = vst.msk [vmem:[#allocation2] sm:$0xff] %vm791, %v696
      %793 = vst.msk [vmem:[#allocation2 + $0x8] sm:$0xff] %vm791, %v698
      %794 = vst.msk [vmem:[#allocation2 + $0x10] sm:$0xff] %vm791, %v700
      %795 = vst.msk [vmem:[#allocation2 + $0x18] sm:$0xff] %vm791, %v702
      %796 = vst.msk [vmem:[#allocation2 + $0x20] sm:$0xff] %vm791, %v704
      %797 = vst.msk [vmem:[#allocation2 + $0x28] sm:$0xff] %vm791, %v706
      %798 = vst.msk [vmem:[#allocation2 + $0x30] sm:$0xff] %vm791, %v708
      %799 = vst.msk [vmem:[#allocation2 + $0x38] sm:$0xff] %vm791, %v710
      %800 = vst.msk [vmem:[#allocation2 + $0x40] sm:$0xff] %vm791, %v712
      %801 = vst.msk [vmem:[#allocation2 + $0x48] sm:$0xff] %vm791, %v714
      %802 = vst.msk [vmem:[#allocation2 + $0x50] sm:$0xff] %vm791, %v716
      %803 = vst.msk [vmem:[#allocation2 + $0x58] sm:$0xff] %vm791, %v718
      %804 = vst.msk [vmem:[#allocation2 + $0x60] sm:$0xff] %vm791, %v720
      %805 = vst.msk [vmem:[#allocation2 + $0x68] sm:$0xff] %vm791, %v722
      %806 = vst.msk [vmem:[#allocation2 + $0x70] sm:$0xff] %vm791, %v724
      %807 = vst.msk [vmem:[#allocation2 + $0x78] sm:$0xff] %vm791, %v726
      %808 = vst.msk [vmem:[#allocation2 + $0x80] sm:$0xff] %vm791, %v728
      %809 = vst.msk [vmem:[#allocation2 + $0x88] sm:$0xff] %vm791, %v730
      %810 = vst.msk [vmem:[#allocation2 + $0x90] sm:$0xff] %vm791, %v732
      %811 = vst.msk [vmem:[#allocation2 + $0x98] sm:$0xff] %vm791, %v734
      %812 = vst.msk [vmem:[#allocation2 + $0xa0] sm:$0xff] %vm791, %v736
      %813 = vst.msk [vmem:[#allocation2 + $0xa8] sm:$0xff] %vm791, %v738
      %814 = vst.msk [vmem:[#allocation2 + $0xb0] sm:$0xff] %vm791, %v740
      %815 = vst.msk [vmem:[#allocation2 + $0xb8] sm:$0xff] %vm791, %v742
      %816 = vst.msk [vmem:[#allocation2 + $0xc0] sm:$0xff] %vm791, %v744
      %817 = vst.msk [vmem:[#allocation2 + $0xc8] sm:$0xff] %vm791, %v746
      %818 = vst.msk [vmem:[#allocation2 + $0xd0] sm:$0xff] %vm791, %v748
      %819 = vst.msk [vmem:[#allocation2 + $0xd8] sm:$0xff] %vm791, %v750
      %820 = vst.msk [vmem:[#allocation2 + $0xe0] sm:$0xff] %vm791, %v752
      %821 = vst.msk [vmem:[#allocation2 + $0xe8] sm:$0xff] %vm791, %v754
      %822 = vst.msk [vmem:[#allocation2 + $0xf0] sm:$0xff] %vm791, %v756
      %823 = vst.msk [vmem:[#allocation2 + $0xf8] sm:$0xff] %vm791, %v758
      %v824 = vld [vmem:[%s630 + $0x1] sm:$0xff]
      %v825 = vld [vmem:[%s630 + $0x9] sm:$0xff]
      %v826 = vld [vmem:[%s630 + $0x19] sm:$0xff]
      %v827 = vld [vmem:[%s630 + $0x21] sm:$0xff]
      %v828 = vld [vmem:[%s630 + $0x31] sm:$0xff]
      %v829 = vld [vmem:[%s630 + $0x39] sm:$0xff]
      %v830 = vld [vmem:[%s630 + $0x49] sm:$0xff]
      %v831 = vld [vmem:[%s630 + $0x51] sm:$0xff]
      %v832 = vld [vmem:[%s630 + $0x61] sm:$0xff]
      %v833 = vld [vmem:[%s630 + $0x69] sm:$0xff]
      %v834 = vld [vmem:[%s630 + $0x79] sm:$0xff]
      %v835 = vld [vmem:[%s630 + $0x81] sm:$0xff]
      %v836 = vld [vmem:[%s630 + $0x91] sm:$0xff]
      %v837 = vld [vmem:[%s630 + $0x99] sm:$0xff]
      %v838 = vld [vmem:[%s630 + $0xa9] sm:$0xff]
      %v839 = vld [vmem:[%s630 + $0xb1] sm:$0xff]
      %v840 = vld [vmem:[%s630 + $0xc1] sm:$0xff]
      %v841 = vld [vmem:[%s630 + $0xc9] sm:$0xff]
      %v842 = vld [vmem:[%s630 + $0xd9] sm:$0xff]
      %v843 = vld [vmem:[%s630 + $0xe1] sm:$0xff]
      %v844 = vld [vmem:[%s630 + $0xf1] sm:$0xff]
      %v845 = vld [vmem:[%s630 + $0xf9] sm:$0xff]
      %v846 = vld [vmem:[%s630 + $0x109] sm:$0xff]
      %v847 = vld [vmem:[%s630 + $0x111] sm:$0xff]
      %v848 = vld [vmem:[%s630 + $0x121] sm:$0xff]
      %v849 = vld [vmem:[%s630 + $0x129] sm:$0xff]
      %v850 = vld [vmem:[%s630 + $0x139] sm:$0xff]
      %v851 = vld [vmem:[%s630 + $0x141] sm:$0xff]
      %v852 = vld [vmem:[%s630 + $0x151] sm:$0xff]
      %v853 = vld [vmem:[%s630 + $0x159] sm:$0xff]
      %v854 = vld [vmem:[%s630 + $0x169] sm:$0xff]
      %v855 = vld [vmem:[%s630 + $0x171] sm:$0xff]
      %888 = vrot.lane.b32.xlu0 %v824, 32
      %v889 = vpop.permute.xlu0 %888
      %890 = vrot.lane.b32.xlu0 %v825, 32
      %v891 = vpop.permute.xlu0 %890
      %892 = vrot.lane.b32.xlu0 %v826, 32
      %v893 = vpop.permute.xlu0 %892
      %894 = vrot.lane.b32.xlu0 %v827, 32
      %v895 = vpop.permute.xlu0 %894
      %896 = vrot.lane.b32.xlu0 %v828, 32
      %v897 = vpop.permute.xlu0 %896
      %898 = vrot.lane.b32.xlu0 %v829, 32
      %v899 = vpop.permute.xlu0 %898
      %900 = vrot.lane.b32.xlu0 %v830, 32
      %v901 = vpop.permute.xlu0 %900
      %902 = vrot.lane.b32.xlu0 %v831, 32
      %v903 = vpop.permute.xlu0 %902
      %904 = vrot.lane.b32.xlu0 %v832, 32
      %v905 = vpop.permute.xlu0 %904
      %906 = vrot.lane.b32.xlu0 %v833, 32
      %v907 = vpop.permute.xlu0 %906
      %908 = vrot.lane.b32.xlu0 %v834, 32
      %v909 = vpop.permute.xlu0 %908
      %910 = vrot.lane.b32.xlu0 %v835, 32
      %v911 = vpop.permute.xlu0 %910
      %912 = vrot.lane.b32.xlu0 %v836, 32
      %v913 = vpop.permute.xlu0 %912
      %914 = vrot.lane.b32.xlu0 %v837, 32
      %v915 = vpop.permute.xlu0 %914
      %916 = vrot.lane.b32.xlu0 %v838, 32
      %v917 = vpop.permute.xlu0 %916
      %918 = vrot.lane.b32.xlu0 %v839, 32
      %v919 = vpop.permute.xlu0 %918
      %920 = vrot.lane.b32.xlu0 %v840, 32
      %v921 = vpop.permute.xlu0 %920
      %922 = vrot.lane.b32.xlu0 %v841, 32
      %v923 = vpop.permute.xlu0 %922
      %924 = vrot.lane.b32.xlu0 %v842, 32
      %v925 = vpop.permute.xlu0 %924
      %926 = vrot.lane.b32.xlu0 %v843, 32
      %v927 = vpop.permute.xlu0 %926
      %928 = vrot.lane.b32.xlu0 %v844, 32
      %v929 = vpop.permute.xlu0 %928
      %930 = vrot.lane.b32.xlu0 %v845, 32
      %v931 = vpop.permute.xlu0 %930
      %932 = vrot.lane.b32.xlu0 %v846, 32
      %v933 = vpop.permute.xlu0 %932
      %934 = vrot.lane.b32.xlu0 %v847, 32
      %v935 = vpop.permute.xlu0 %934
      %936 = vrot.lane.b32.xlu0 %v848, 32
      %v937 = vpop.permute.xlu0 %936
      %938 = vrot.lane.b32.xlu0 %v849, 32
      %v939 = vpop.permute.xlu0 %938
      %940 = vrot.lane.b32.xlu0 %v850, 32
      %v941 = vpop.permute.xlu0 %940
      %942 = vrot.lane.b32.xlu0 %v851, 32
      %v943 = vpop.permute.xlu0 %942
      %944 = vrot.lane.b32.xlu0 %v852, 32
      %v945 = vpop.permute.xlu0 %944
      %946 = vrot.lane.b32.xlu0 %v853, 32
      %v947 = vpop.permute.xlu0 %946
      %948 = vrot.lane.b32.xlu0 %v854, 32
      %v949 = vpop.permute.xlu0 %948
      %950 = vrot.lane.b32.xlu0 %v855, 32
      %v951 = vpop.permute.xlu0 %950
      %vm984 = vcmask 326912
      %985 = vst.msk [vmem:[#allocation2] sm:$0xff] %vm984, %v889
      %986 = vst.msk [vmem:[#allocation2 + $0x8] sm:$0xff] %vm984, %v891
      %987 = vst.msk [vmem:[#allocation2 + $0x10] sm:$0xff] %vm984, %v893
      %988 = vst.msk [vmem:[#allocation2 + $0x18] sm:$0xff] %vm984, %v895
      %989 = vst.msk [vmem:[#allocation2 + $0x20] sm:$0xff] %vm984, %v897
      %990 = vst.msk [vmem:[#allocation2 + $0x28] sm:$0xff] %vm984, %v899
      %991 = vst.msk [vmem:[#allocation2 + $0x30] sm:$0xff] %vm984, %v901
      %992 = vst.msk [vmem:[#allocation2 + $0x38] sm:$0xff] %vm984, %v903
      %993 = vst.msk [vmem:[#allocation2 + $0x40] sm:$0xff] %vm984, %v905
      %994 = vst.msk [vmem:[#allocation2 + $0x48] sm:$0xff] %vm984, %v907
      %995 = vst.msk [vmem:[#allocation2 + $0x50] sm:$0xff] %vm984, %v909
      %996 = vst.msk [vmem:[#allocation2 + $0x58] sm:$0xff] %vm984, %v911
      %997 = vst.msk [vmem:[#allocation2 + $0x60] sm:$0xff] %vm984, %v913
      %998 = vst.msk [vmem:[#allocation2 + $0x68] sm:$0xff] %vm984, %v915
      %999 = vst.msk [vmem:[#allocation2 + $0x70] sm:$0xff] %vm984, %v917
      %1000 = vst.msk [vmem:[#allocation2 + $0x78] sm:$0xff] %vm984, %v919
      %1001 = vst.msk [vmem:[#allocation2 + $0x80] sm:$0xff] %vm984, %v921
      %1002 = vst.msk [vmem:[#allocation2 + $0x88] sm:$0xff] %vm984, %v923
      %1003 = vst.msk [vmem:[#allocation2 + $0x90] sm:$0xff] %vm984, %v925
      %1004 = vst.msk [vmem:[#allocation2 + $0x98] sm:$0xff] %vm984, %v927
      %1005 = vst.msk [vmem:[#allocation2 + $0xa0] sm:$0xff] %vm984, %v929
      %1006 = vst.msk [vmem:[#allocation2 + $0xa8] sm:$0xff] %vm984, %v931
      %1007 = vst.msk [vmem:[#allocation2 + $0xb0] sm:$0xff] %vm984, %v933
      %1008 = vst.msk [vmem:[#allocation2 + $0xb8] sm:$0xff] %vm984, %v935
      %1009 = vst.msk [vmem:[#allocation2 + $0xc0] sm:$0xff] %vm984, %v937
      %1010 = vst.msk [vmem:[#allocation2 + $0xc8] sm:$0xff] %vm984, %v939
      %1011 = vst.msk [vmem:[#allocation2 + $0xd0] sm:$0xff] %vm984, %v941
      %1012 = vst.msk [vmem:[#allocation2 + $0xd8] sm:$0xff] %vm984, %v943
      %1013 = vst.msk [vmem:[#allocation2 + $0xe0] sm:$0xff] %vm984, %v945
      %1014 = vst.msk [vmem:[#allocation2 + $0xe8] sm:$0xff] %vm984, %v947
      %1015 = vst.msk [vmem:[#allocation2 + $0xf0] sm:$0xff] %vm984, %v949
      %1016 = vst.msk [vmem:[#allocation2 + $0xf8] sm:$0xff] %vm984, %v951
      %v1017 = vld [vmem:[%s630 + $0x2] sm:$0xff]
      %v1018 = vld [vmem:[%s630 + $0xa] sm:$0xff]
      %v1019 = vld [vmem:[%s630 + $0x1a] sm:$0xff]
      %v1020 = vld [vmem:[%s630 + $0x22] sm:$0xff]
      %v1021 = vld [vmem:[%s630 + $0x32] sm:$0xff]
      %v1022 = vld [vmem:[%s630 + $0x3a] sm:$0xff]
      %v1023 = vld [vmem:[%s630 + $0x4a] sm:$0xff]
      %v1024 = vld [vmem:[%s630 + $0x52] sm:$0xff]
      %v1025 = vld [vmem:[%s630 + $0x62] sm:$0xff]
      %v1026 = vld [vmem:[%s630 + $0x6a] sm:$0xff]
      %v1027 = vld [vmem:[%s630 + $0x7a] sm:$0xff]
      %v1028 = vld [vmem:[%s630 + $0x82] sm:$0xff]
      %v1029 = vld [vmem:[%s630 + $0x92] sm:$0xff]
      %v1030 = vld [vmem:[%s630 + $0x9a] sm:$0xff]
      %v1031 = vld [vmem:[%s630 + $0xaa] sm:$0xff]
      %v1032 = vld [vmem:[%s630 + $0xb2] sm:$0xff]
      %v1033 = vld [vmem:[%s630 + $0xc2] sm:$0xff]
      %v1034 = vld [vmem:[%s630 + $0xca] sm:$0xff]
      %v1035 = vld [vmem:[%s630 + $0xda] sm:$0xff]
      %v1036 = vld [vmem:[%s630 + $0xe2] sm:$0xff]
      %v1037 = vld [vmem:[%s630 + $0xf2] sm:$0xff]
      %v1038 = vld [vmem:[%s630 + $0xfa] sm:$0xff]
      %v1039 = vld [vmem:[%s630 + $0x10a] sm:$0xff]
      %v1040 = vld [vmem:[%s630 + $0x112] sm:$0xff]
      %v1041 = vld [vmem:[%s630 + $0x122] sm:$0xff]
      %v1042 = vld [vmem:[%s630 + $0x12a] sm:$0xff]
      %v1043 = vld [vmem:[%s630 + $0x13a] sm:$0xff]
      %v1044 = vld [vmem:[%s630 + $0x142] sm:$0xff]
      %v1045 = vld [vmem:[%s630 + $0x152] sm:$0xff]
      %v1046 = vld [vmem:[%s630 + $0x15a] sm:$0xff]
      %v1047 = vld [vmem:[%s630 + $0x16a] sm:$0xff]
      %v1048 = vld [vmem:[%s630 + $0x172] sm:$0xff]
      %1081 = vrot.lane.b32.xlu0 %v1017, 40
      %v1082 = vpop.permute.xlu0 %1081
      %1083 = vrot.lane.b32.xlu0 %v1018, 40
      %v1084 = vpop.permute.xlu0 %1083
      %1085 = vrot.lane.b32.xlu0 %v1019, 40
      %v1086 = vpop.permute.xlu0 %1085
      %1087 = vrot.lane.b32.xlu0 %v1020, 40
      %v1088 = vpop.permute.xlu0 %1087
      %1089 = vrot.lane.b32.xlu0 %v1021, 40
      %v1090 = vpop.permute.xlu0 %1089
      %1091 = vrot.lane.b32.xlu0 %v1022, 40
      %v1092 = vpop.permute.xlu0 %1091
      %1093 = vrot.lane.b32.xlu0 %v1023, 40
      %v1094 = vpop.permute.xlu0 %1093
      %1095 = vrot.lane.b32.xlu0 %v1024, 40
      %v1096 = vpop.permute.xlu0 %1095
      %1097 = vrot.lane.b32.xlu0 %v1025, 40
      %v1098 = vpop.permute.xlu0 %1097
      %1099 = vrot.lane.b32.xlu0 %v1026, 40
      %v1100 = vpop.permute.xlu0 %1099
      %1101 = vrot.lane.b32.xlu0 %v1027, 40
      %v1102 = vpop.permute.xlu0 %1101
      %1103 = vrot.lane.b32.xlu0 %v1028, 40
      %v1104 = vpop.permute.xlu0 %1103
      %1105 = vrot.lane.b32.xlu0 %v1029, 40
      %v1106 = vpop.permute.xlu0 %1105
      %1107 = vrot.lane.b32.xlu0 %v1030, 40
      %v1108 = vpop.permute.xlu0 %1107
      %1109 = vrot.lane.b32.xlu0 %v1031, 40
      %v1110 = vpop.permute.xlu0 %1109
      %1111 = vrot.lane.b32.xlu0 %v1032, 40
      %v1112 = vpop.permute.xlu0 %1111
      %1113 = vrot.lane.b32.xlu0 %v1033, 40
      %v1114 = vpop.permute.xlu0 %1113
      %1115 = vrot.lane.b32.xlu0 %v1034, 40
      %v1116 = vpop.permute.xlu0 %1115
      %1117 = vrot.lane.b32.xlu0 %v1035, 40
      %v1118 = vpop.permute.xlu0 %1117
      %1119 = vrot.lane.b32.xlu0 %v1036, 40
      %v1120 = vpop.permute.xlu0 %1119
      %1121 = vrot.lane.b32.xlu0 %v1037, 40
      %v1122 = vpop.permute.xlu0 %1121
      %1123 = vrot.lane.b32.xlu0 %v1038, 40
      %v1124 = vpop.permute.xlu0 %1123
      %1125 = vrot.lane.b32.xlu0 %v1039, 40
      %v1126 = vpop.permute.xlu0 %1125
      %1127 = vrot.lane.b32.xlu0 %v1040, 40
      %v1128 = vpop.permute.xlu0 %1127
      %1129 = vrot.lane.b32.xlu0 %v1041, 40
      %v1130 = vpop.permute.xlu0 %1129
      %1131 = vrot.lane.b32.xlu0 %v1042, 40
      %v1132 = vpop.permute.xlu0 %1131
      %1133 = vrot.lane.b32.xlu0 %v1043, 40
      %v1134 = vpop.permute.xlu0 %1133
      %1135 = vrot.lane.b32.xlu0 %v1044, 40
      %v1136 = vpop.permute.xlu0 %1135
      %1137 = vrot.lane.b32.xlu0 %v1045, 40
      %v1138 = vpop.permute.xlu0 %1137
      %1139 = vrot.lane.b32.xlu0 %v1046, 40
      %v1140 = vpop.permute.xlu0 %1139
      %1141 = vrot.lane.b32.xlu0 %v1047, 40
      %v1142 = vpop.permute.xlu0 %1141
      %1143 = vrot.lane.b32.xlu0 %v1048, 40
      %v1144 = vpop.permute.xlu0 %1143
      %vm1177 = vcmask 392512
      %1178 = vst.msk [vmem:[#allocation2] sm:$0xff] %vm1177, %v1082
      %1179 = vst.msk [vmem:[#allocation2 + $0x8] sm:$0xff] %vm1177, %v1084
      %1180 = vst.msk [vmem:[#allocation2 + $0x10] sm:$0xff] %vm1177, %v1086
      %1181 = vst.msk [vmem:[#allocation2 + $0x18] sm:$0xff] %vm1177, %v1088
      %1182 = vst.msk [vmem:[#allocation2 + $0x20] sm:$0xff] %vm1177, %v1090
      %1183 = vst.msk [vmem:[#allocation2 + $0x28] sm:$0xff] %vm1177, %v1092
      %1184 = vst.msk [vmem:[#allocation2 + $0x30] sm:$0xff] %vm1177, %v1094
      %1185 = vst.msk [vmem:[#allocation2 + $0x38] sm:$0xff] %vm1177, %v1096
      %1186 = vst.msk [vmem:[#allocation2 + $0x40] sm:$0xff] %vm1177, %v1098
      %1187 = vst.msk [vmem:[#allocation2 + $0x48] sm:$0xff] %vm1177, %v1100
      %1188 = vst.msk [vmem:[#allocation2 + $0x50] sm:$0xff] %vm1177, %v1102
      %1189 = vst.msk [vmem:[#allocation2 + $0x58] sm:$0xff] %vm1177, %v1104
      %1190 = vst.msk [vmem:[#allocation2 + $0x60] sm:$0xff] %vm1177, %v1106
      %1191 = vst.msk [vmem:[#allocation2 + $0x68] sm:$0xff] %vm1177, %v1108
      %1192 = vst.msk [vmem:[#allocation2 + $0x70] sm:$0xff] %vm1177, %v1110
      %1193 = vst.msk [vmem:[#allocation2 + $0x78] sm:$0xff] %vm1177, %v1112
      %1194 = vst.msk [vmem:[#allocation2 + $0x80] sm:$0xff] %vm1177, %v1114
      %1195 = vst.msk [vmem:[#allocation2 + $0x88] sm:$0xff] %vm1177, %v1116
      %1196 = vst.msk [vmem:[#allocation2 + $0x90] sm:$0xff] %vm1177, %v1118
      %1197 = vst.msk [vmem:[#allocation2 + $0x98] sm:$0xff] %vm1177, %v1120
      %1198 = vst.msk [vmem:[#allocation2 + $0xa0] sm:$0xff] %vm1177, %v1122
      %1199 = vst.msk [vmem:[#allocation2 + $0xa8] sm:$0xff] %vm1177, %v1124
      %1200 = vst.msk [vmem:[#allocation2 + $0xb0] sm:$0xff] %vm1177, %v1126
      %1201 = vst.msk [vmem:[#allocation2 + $0xb8] sm:$0xff] %vm1177, %v1128
      %1202 = vst.msk [vmem:[#allocation2 + $0xc0] sm:$0xff] %vm1177, %v1130
      %1203 = vst.msk [vmem:[#allocation2 + $0xc8] sm:$0xff] %vm1177, %v1132
      %1204 = vst.msk [vmem:[#allocation2 + $0xd0] sm:$0xff] %vm1177, %v1134
      %1205 = vst.msk [vmem:[#allocation2 + $0xd8] sm:$0xff] %vm1177, %v1136
      %1206 = vst.msk [vmem:[#allocation2 + $0xe0] sm:$0xff] %vm1177, %v1138
      %1207 = vst.msk [vmem:[#allocation2 + $0xe8] sm:$0xff] %vm1177, %v1140
      %1208 = vst.msk [vmem:[#allocation2 + $0xf0] sm:$0xff] %vm1177, %v1142
      %1209 = vst.msk [vmem:[#allocation2 + $0xf8] sm:$0xff] %vm1177, %v1144
      %s1210 = scalar_lea.vmem %s170, 96
      %v1211 = vld [vmem:[%s1210] sm:$0xff]
      %v1212 = vld [vmem:[%s1210 + $0x8] sm:$0xff]
      %v1213 = vld [vmem:[%s1210 + $0x18] sm:$0xff]
      %v1214 = vld [vmem:[%s1210 + $0x20] sm:$0xff]
      %v1215 = vld [vmem:[%s1210 + $0x30] sm:$0xff]
      %v1216 = vld [vmem:[%s1210 + $0x38] sm:$0xff]
      %v1217 = vld [vmem:[%s1210 + $0x48] sm:$0xff]
      %v1218 = vld [vmem:[%s1210 + $0x50] sm:$0xff]
      %v1219 = vld [vmem:[%s1210 + $0x60] sm:$0xff]
      %v1220 = vld [vmem:[%s1210 + $0x68] sm:$0xff]
      %v1221 = vld [vmem:[%s1210 + $0x78] sm:$0xff]
      %v1222 = vld [vmem:[%s1210 + $0x80] sm:$0xff]
      %v1223 = vld [vmem:[%s1210 + $0x90] sm:$0xff]
      %v1224 = vld [vmem:[%s1210 + $0x98] sm:$0xff]
      %v1225 = vld [vmem:[%s1210 + $0xa8] sm:$0xff]
      %v1226 = vld [vmem:[%s1210 + $0xb0] sm:$0xff]
      %v1227 = vld [vmem:[%s1210 + $0xc0] sm:$0xff]
      %v1228 = vld [vmem:[%s1210 + $0xc8] sm:$0xff]
      %v1229 = vld [vmem:[%s1210 + $0xd8] sm:$0xff]
      %v1230 = vld [vmem:[%s1210 + $0xe0] sm:$0xff]
      %v1231 = vld [vmem:[%s1210 + $0xf0] sm:$0xff]
      %v1232 = vld [vmem:[%s1210 + $0xf8] sm:$0xff]
      %v1233 = vld [vmem:[%s1210 + $0x108] sm:$0xff]
      %v1234 = vld [vmem:[%s1210 + $0x110] sm:$0xff]
      %v1235 = vld [vmem:[%s1210 + $0x120] sm:$0xff]
      %v1236 = vld [vmem:[%s1210 + $0x128] sm:$0xff]
      %v1237 = vld [vmem:[%s1210 + $0x138] sm:$0xff]
      %v1238 = vld [vmem:[%s1210 + $0x140] sm:$0xff]
      %v1239 = vld [vmem:[%s1210 + $0x150] sm:$0xff]
      %v1240 = vld [vmem:[%s1210 + $0x158] sm:$0xff]
      %v1241 = vld [vmem:[%s1210 + $0x168] sm:$0xff]
      %v1242 = vld [vmem:[%s1210 + $0x170] sm:$0xff]
      %1275 = vrot.lane.b32.xlu0 %v1211, 48
      %v1276 = vpop.permute.xlu0 %1275
      %1277 = vrot.lane.b32.xlu0 %v1212, 48
      %v1278 = vpop.permute.xlu0 %1277
      %1279 = vrot.lane.b32.xlu0 %v1213, 48
      %v1280 = vpop.permute.xlu0 %1279
      %1281 = vrot.lane.b32.xlu0 %v1214, 48
      %v1282 = vpop.permute.xlu0 %1281
      %1283 = vrot.lane.b32.xlu0 %v1215, 48
      %v1284 = vpop.permute.xlu0 %1283
      %1285 = vrot.lane.b32.xlu0 %v1216, 48
      %v1286 = vpop.permute.xlu0 %1285
      %1287 = vrot.lane.b32.xlu0 %v1217, 48
      %v1288 = vpop.permute.xlu0 %1287
      %1289 = vrot.lane.b32.xlu0 %v1218, 48
      %v1290 = vpop.permute.xlu0 %1289
      %1291 = vrot.lane.b32.xlu0 %v1219, 48
      %v1292 = vpop.permute.xlu0 %1291
      %1293 = vrot.lane.b32.xlu0 %v1220, 48
      %v1294 = vpop.permute.xlu0 %1293
      %1295 = vrot.lane.b32.xlu0 %v1221, 48
      %v1296 = vpop.permute.xlu0 %1295
      %1297 = vrot.lane.b32.xlu0 %v1222, 48
      %v1298 = vpop.permute.xlu0 %1297
      %1299 = vrot.lane.b32.xlu0 %v1223, 48
      %v1300 = vpop.permute.xlu0 %1299
      %1301 = vrot.lane.b32.xlu0 %v1224, 48
      %v1302 = vpop.permute.xlu0 %1301
      %1303 = vrot.lane.b32.xlu0 %v1225, 48
      %v1304 = vpop.permute.xlu0 %1303
      %1305 = vrot.lane.b32.xlu0 %v1226, 48
      %v1306 = vpop.permute.xlu0 %1305
      %1307 = vrot.lane.b32.xlu0 %v1227, 48
      %v1308 = vpop.permute.xlu0 %1307
      %1309 = vrot.lane.b32.xlu0 %v1228, 48
      %v1310 = vpop.permute.xlu0 %1309
      %1311 = vrot.lane.b32.xlu0 %v1229, 48
      %v1312 = vpop.permute.xlu0 %1311
      %1313 = vrot.lane.b32.xlu0 %v1230, 48
      %v1314 = vpop.permute.xlu0 %1313
      %1315 = vrot.lane.b32.xlu0 %v1231, 48
      %v1316 = vpop.permute.xlu0 %1315
      %1317 = vrot.lane.b32.xlu0 %v1232, 48
      %v1318 = vpop.permute.xlu0 %1317
      %1319 = vrot.lane.b32.xlu0 %v1233, 48
      %v1320 = vpop.permute.xlu0 %1319
      %1321 = vrot.lane.b32.xlu0 %v1234, 48
      %v1322 = vpop.permute.xlu0 %1321
      %1323 = vrot.lane.b32.xlu0 %v1235, 48
      %v1324 = vpop.permute.xlu0 %1323
      %1325 = vrot.lane.b32.xlu0 %v1236, 48
      %v1326 = vpop.permute.xlu0 %1325
      %1327 = vrot.lane.b32.xlu0 %v1237, 48
      %v1328 = vpop.permute.xlu0 %1327
      %1329 = vrot.lane.b32.xlu0 %v1238, 48
      %v1330 = vpop.permute.xlu0 %1329
      %1331 = vrot.lane.b32.xlu0 %v1239, 48
      %v1332 = vpop.permute.xlu0 %1331
      %1333 = vrot.lane.b32.xlu0 %v1240, 48
      %v1334 = vpop.permute.xlu0 %1333
      %1335 = vrot.lane.b32.xlu0 %v1241, 48
      %v1336 = vpop.permute.xlu0 %1335
      %1337 = vrot.lane.b32.xlu0 %v1242, 48
      %v1338 = vpop.permute.xlu0 %1337
      %vm1371 = vcmask 458112
      %1372 = vst.msk [vmem:[#allocation2] sm:$0xff] %vm1371, %v1276
      %1373 = vst.msk [vmem:[#allocation2 + $0x8] sm:$0xff] %vm1371, %v1278
      %1374 = vst.msk [vmem:[#allocation2 + $0x10] sm:$0xff] %vm1371, %v1280
      %1375 = vst.msk [vmem:[#allocation2 + $0x18] sm:$0xff] %vm1371, %v1282
      %1376 = vst.msk [vmem:[#allocation2 + $0x20] sm:$0xff] %vm1371, %v1284
      %1377 = vst.msk [vmem:[#allocation2 + $0x28] sm:$0xff] %vm1371, %v1286
      %1378 = vst.msk [vmem:[#allocation2 + $0x30] sm:$0xff] %vm1371, %v1288
      %1379 = vst.msk [vmem:[#allocation2 + $0x38] sm:$0xff] %vm1371, %v1290
      %1380 = vst.msk [vmem:[#allocation2 + $0x40] sm:$0xff] %vm1371, %v1292
      %1381 = vst.msk [vmem:[#allocation2 + $0x48] sm:$0xff] %vm1371, %v1294
      %1382 = vst.msk [vmem:[#allocation2 + $0x50] sm:$0xff] %vm1371, %v1296
      %1383 = vst.msk [vmem:[#allocation2 + $0x58] sm:$0xff] %vm1371, %v1298
      %1384 = vst.msk [vmem:[#allocation2 + $0x60] sm:$0xff] %vm1371, %v1300
      %1385 = vst.msk [vmem:[#allocation2 + $0x68] sm:$0xff] %vm1371, %v1302
      %1386 = vst.msk [vmem:[#allocation2 + $0x70] sm:$0xff] %vm1371, %v1304
      %1387 = vst.msk [vmem:[#allocation2 + $0x78] sm:$0xff] %vm1371, %v1306
      %1388 = vst.msk [vmem:[#allocation2 + $0x80] sm:$0xff] %vm1371, %v1308
      %1389 = vst.msk [vmem:[#allocation2 + $0x88] sm:$0xff] %vm1371, %v1310
      %1390 = vst.msk [vmem:[#allocation2 + $0x90] sm:$0xff] %vm1371, %v1312
      %1391 = vst.msk [vmem:[#allocation2 + $0x98] sm:$0xff] %vm1371, %v1314
      %1392 = vst.msk [vmem:[#allocation2 + $0xa0] sm:$0xff] %vm1371, %v1316
      %1393 = vst.msk [vmem:[#allocation2 + $0xa8] sm:$0xff] %vm1371, %v1318
      %1394 = vst.msk [vmem:[#allocation2 + $0xb0] sm:$0xff] %vm1371, %v1320
      %1395 = vst.msk [vmem:[#allocation2 + $0xb8] sm:$0xff] %vm1371, %v1322
      %1396 = vst.msk [vmem:[#allocation2 + $0xc0] sm:$0xff] %vm1371, %v1324
      %1397 = vst.msk [vmem:[#allocation2 + $0xc8] sm:$0xff] %vm1371, %v1326
      %1398 = vst.msk [vmem:[#allocation2 + $0xd0] sm:$0xff] %vm1371, %v1328
      %1399 = vst.msk [vmem:[#allocation2 + $0xd8] sm:$0xff] %vm1371, %v1330
      %1400 = vst.msk [vmem:[#allocation2 + $0xe0] sm:$0xff] %vm1371, %v1332
      %1401 = vst.msk [vmem:[#allocation2 + $0xe8] sm:$0xff] %vm1371, %v1334
      %1402 = vst.msk [vmem:[#allocation2 + $0xf0] sm:$0xff] %vm1371, %v1336
      %1403 = vst.msk [vmem:[#allocation2 + $0xf8] sm:$0xff] %vm1371, %v1338
      %v1404 = vld [vmem:[%s1210 + $0x1] sm:$0xff]
      %v1405 = vld [vmem:[%s1210 + $0x9] sm:$0xff]
      %v1406 = vld [vmem:[%s1210 + $0x19] sm:$0xff]
      %v1407 = vld [vmem:[%s1210 + $0x21] sm:$0xff]
      %v1408 = vld [vmem:[%s1210 + $0x31] sm:$0xff]
      %v1409 = vld [vmem:[%s1210 + $0x39] sm:$0xff]
      %v1410 = vld [vmem:[%s1210 + $0x49] sm:$0xff]
      %v1411 = vld [vmem:[%s1210 + $0x51] sm:$0xff]
      %v1412 = vld [vmem:[%s1210 + $0x61] sm:$0xff]
      %v1413 = vld [vmem:[%s1210 + $0x69] sm:$0xff]
      %v1414 = vld [vmem:[%s1210 + $0x79] sm:$0xff]
      %v1415 = vld [vmem:[%s1210 + $0x81] sm:$0xff]
      %v1416 = vld [vmem:[%s1210 + $0x91] sm:$0xff]
      %v1417 = vld [vmem:[%s1210 + $0x99] sm:$0xff]
      %v1418 = vld [vmem:[%s1210 + $0xa9] sm:$0xff]
      %v1419 = vld [vmem:[%s1210 + $0xb1] sm:$0xff]
      %v1420 = vld [vmem:[%s1210 + $0xc1] sm:$0xff]
      %v1421 = vld [vmem:[%s1210 + $0xc9] sm:$0xff]
      %v1422 = vld [vmem:[%s1210 + $0xd9] sm:$0xff]
      %v1423 = vld [vmem:[%s1210 + $0xe1] sm:$0xff]
      %v1424 = vld [vmem:[%s1210 + $0xf1] sm:$0xff]
      %v1425 = vld [vmem:[%s1210 + $0xf9] sm:$0xff]
      %v1426 = vld [vmem:[%s1210 + $0x109] sm:$0xff]
      %v1427 = vld [vmem:[%s1210 + $0x111] sm:$0xff]
      %v1428 = vld [vmem:[%s1210 + $0x121] sm:$0xff]
      %v1429 = vld [vmem:[%s1210 + $0x129] sm:$0xff]
      %v1430 = vld [vmem:[%s1210 + $0x139] sm:$0xff]
      %v1431 = vld [vmem:[%s1210 + $0x141] sm:$0xff]
      %v1432 = vld [vmem:[%s1210 + $0x151] sm:$0xff]
      %v1433 = vld [vmem:[%s1210 + $0x159] sm:$0xff]
      %v1434 = vld [vmem:[%s1210 + $0x169] sm:$0xff]
      %v1435 = vld [vmem:[%s1210 + $0x171] sm:$0xff]
      %1468 = vrot.lane.b32.xlu0 %v1404, 56
      %v1469 = vpop.permute.xlu0 %1468
      %1470 = vrot.lane.b32.xlu0 %v1405, 56
      %v1471 = vpop.permute.xlu0 %1470
      %1472 = vrot.lane.b32.xlu0 %v1406, 56
      %v1473 = vpop.permute.xlu0 %1472
      %1474 = vrot.lane.b32.xlu0 %v1407, 56
      %v1475 = vpop.permute.xlu0 %1474
      %1476 = vrot.lane.b32.xlu0 %v1408, 56
      %v1477 = vpop.permute.xlu0 %1476
      %1478 = vrot.lane.b32.xlu0 %v1409, 56
      %v1479 = vpop.permute.xlu0 %1478
      %1480 = vrot.lane.b32.xlu0 %v1410, 56
      %v1481 = vpop.permute.xlu0 %1480
      %1482 = vrot.lane.b32.xlu0 %v1411, 56
      %v1483 = vpop.permute.xlu0 %1482
      %1484 = vrot.lane.b32.xlu0 %v1412, 56
      %v1485 = vpop.permute.xlu0 %1484
      %1486 = vrot.lane.b32.xlu0 %v1413, 56
      %v1487 = vpop.permute.xlu0 %1486
      %1488 = vrot.lane.b32.xlu0 %v1414, 56
      %v1489 = vpop.permute.xlu0 %1488
      %1490 = vrot.lane.b32.xlu0 %v1415, 56
      %v1491 = vpop.permute.xlu0 %1490
      %1492 = vrot.lane.b32.xlu0 %v1416, 56
      %v1493 = vpop.permute.xlu0 %1492
      %1494 = vrot.lane.b32.xlu0 %v1417, 56
      %v1495 = vpop.permute.xlu0 %1494
      %1496 = vrot.lane.b32.xlu0 %v1418, 56
      %v1497 = vpop.permute.xlu0 %1496
      %1498 = vrot.lane.b32.xlu0 %v1419, 56
      %v1499 = vpop.permute.xlu0 %1498
      %1500 = vrot.lane.b32.xlu0 %v1420, 56
      %v1501 = vpop.permute.xlu0 %1500
      %1502 = vrot.lane.b32.xlu0 %v1421, 56
      %v1503 = vpop.permute.xlu0 %1502
      %1504 = vrot.lane.b32.xlu0 %v1422, 56
      %v1505 = vpop.permute.xlu0 %1504
      %1506 = vrot.lane.b32.xlu0 %v1423, 56
      %v1507 = vpop.permute.xlu0 %1506
      %1508 = vrot.lane.b32.xlu0 %v1424, 56
      %v1509 = vpop.permute.xlu0 %1508
      %1510 = vrot.lane.b32.xlu0 %v1425, 56
      %v1511 = vpop.permute.xlu0 %1510
      %1512 = vrot.lane.b32.xlu0 %v1426, 56
      %v1513 = vpop.permute.xlu0 %1512
      %1514 = vrot.lane.b32.xlu0 %v1427, 56
      %v1515 = vpop.permute.xlu0 %1514
      %1516 = vrot.lane.b32.xlu0 %v1428, 56
      %v1517 = vpop.permute.xlu0 %1516
      %1518 = vrot.lane.b32.xlu0 %v1429, 56
      %v1519 = vpop.permute.xlu0 %1518
      %1520 = vrot.lane.b32.xlu0 %v1430, 56
      %v1521 = vpop.permute.xlu0 %1520
      %1522 = vrot.lane.b32.xlu0 %v1431, 56
      %v1523 = vpop.permute.xlu0 %1522
      %1524 = vrot.lane.b32.xlu0 %v1432, 56
      %v1525 = vpop.permute.xlu0 %1524
      %1526 = vrot.lane.b32.xlu0 %v1433, 56
      %v1527 = vpop.permute.xlu0 %1526
      %1528 = vrot.lane.b32.xlu0 %v1434, 56
      %v1529 = vpop.permute.xlu0 %1528
      %1530 = vrot.lane.b32.xlu0 %v1435, 56
      %v1531 = vpop.permute.xlu0 %1530
      %vm1564 = vcmask 523712
      %1565 = vst.msk [vmem:[#allocation2] sm:$0xff] %vm1564, %v1469
      %1566 = vst.msk [vmem:[#allocation2 + $0x8] sm:$0xff] %vm1564, %v1471
      %1567 = vst.msk [vmem:[#allocation2 + $0x10] sm:$0xff] %vm1564, %v1473
      %1568 = vst.msk [vmem:[#allocation2 + $0x18] sm:$0xff] %vm1564, %v1475
      %1569 = vst.msk [vmem:[#allocation2 + $0x20] sm:$0xff] %vm1564, %v1477
      %1570 = vst.msk [vmem:[#allocation2 + $0x28] sm:$0xff] %vm1564, %v1479
      %1571 = vst.msk [vmem:[#allocation2 + $0x30] sm:$0xff] %vm1564, %v1481
      %1572 = vst.msk [vmem:[#allocation2 + $0x38] sm:$0xff] %vm1564, %v1483
      %1573 = vst.msk [vmem:[#allocation2 + $0x40] sm:$0xff] %vm1564, %v1485
      %1574 = vst.msk [vmem:[#allocation2 + $0x48] sm:$0xff] %vm1564, %v1487
      %1575 = vst.msk [vmem:[#allocation2 + $0x50] sm:$0xff] %vm1564, %v1489
      %1576 = vst.msk [vmem:[#allocation2 + $0x58] sm:$0xff] %vm1564, %v1491
      %1577 = vst.msk [vmem:[#allocation2 + $0x60] sm:$0xff] %vm1564, %v1493
      %1578 = vst.msk [vmem:[#allocation2 + $0x68] sm:$0xff] %vm1564, %v1495
      %1579 = vst.msk [vmem:[#allocation2 + $0x70] sm:$0xff] %vm1564, %v1497
      %1580 = vst.msk [vmem:[#allocation2 + $0x78] sm:$0xff] %vm1564, %v1499
      %1581 = vst.msk [vmem:[#allocation2 + $0x80] sm:$0xff] %vm1564, %v1501
      %1582 = vst.msk [vmem:[#allocation2 + $0x88] sm:$0xff] %vm1564, %v1503
      %1583 = vst.msk [vmem:[#allocation2 + $0x90] sm:$0xff] %vm1564, %v1505
      %1584 = vst.msk [vmem:[#allocation2 + $0x98] sm:$0xff] %vm1564, %v1507
      %1585 = vst.msk [vmem:[#allocation2 + $0xa0] sm:$0xff] %vm1564, %v1509
      %1586 = vst.msk [vmem:[#allocation2 + $0xa8] sm:$0xff] %vm1564, %v1511
      %1587 = vst.msk [vmem:[#allocation2 + $0xb0] sm:$0xff] %vm1564, %v1513
      %1588 = vst.msk [vmem:[#allocation2 + $0xb8] sm:$0xff] %vm1564, %v1515
      %1589 = vst.msk [vmem:[#allocation2 + $0xc0] sm:$0xff] %vm1564, %v1517
      %1590 = vst.msk [vmem:[#allocation2 + $0xc8] sm:$0xff] %vm1564, %v1519
      %1591 = vst.msk [vmem:[#allocation2 + $0xd0] sm:$0xff] %vm1564, %v1521
      %1592 = vst.msk [vmem:[#allocation2 + $0xd8] sm:$0xff] %vm1564, %v1523
      %1593 = vst.msk [vmem:[#allocation2 + $0xe0] sm:$0xff] %vm1564, %v1525
      %1594 = vst.msk [vmem:[#allocation2 + $0xe8] sm:$0xff] %vm1564, %v1527
      %1595 = vst.msk [vmem:[#allocation2 + $0xf0] sm:$0xff] %vm1564, %v1529
      %1596 = vst.msk [vmem:[#allocation2 + $0xf8] sm:$0xff] %vm1564, %v1531
      %v1597 = vld [vmem:[%s1210 + $0x2] sm:$0xff]
      %v1598 = vld [vmem:[%s1210 + $0xa] sm:$0xff]
      %v1599 = vld [vmem:[%s1210 + $0x1a] sm:$0xff]
      %v1600 = vld [vmem:[%s1210 + $0x22] sm:$0xff]
      %v1601 = vld [vmem:[%s1210 + $0x32] sm:$0xff]
      %v1602 = vld [vmem:[%s1210 + $0x3a] sm:$0xff]
      %v1603 = vld [vmem:[%s1210 + $0x4a] sm:$0xff]
      %v1604 = vld [vmem:[%s1210 + $0x52] sm:$0xff]
      %v1605 = vld [vmem:[%s1210 + $0x62] sm:$0xff]
      %v1606 = vld [vmem:[%s1210 + $0x6a] sm:$0xff]
      %v1607 = vld [vmem:[%s1210 + $0x7a] sm:$0xff]
      %v1608 = vld [vmem:[%s1210 + $0x82] sm:$0xff]
      %v1609 = vld [vmem:[%s1210 + $0x92] sm:$0xff]
      %v1610 = vld [vmem:[%s1210 + $0x9a] sm:$0xff]
      %v1611 = vld [vmem:[%s1210 + $0xaa] sm:$0xff]
      %v1612 = vld [vmem:[%s1210 + $0xb2] sm:$0xff]
      %v1613 = vld [vmem:[%s1210 + $0xc2] sm:$0xff]
      %v1614 = vld [vmem:[%s1210 + $0xca] sm:$0xff]
      %v1615 = vld [vmem:[%s1210 + $0xda] sm:$0xff]
      %v1616 = vld [vmem:[%s1210 + $0xe2] sm:$0xff]
      %v1617 = vld [vmem:[%s1210 + $0xf2] sm:$0xff]
      %v1618 = vld [vmem:[%s1210 + $0xfa] sm:$0xff]
      %v1619 = vld [vmem:[%s1210 + $0x10a] sm:$0xff]
      %v1620 = vld [vmem:[%s1210 + $0x112] sm:$0xff]
      %v1621 = vld [vmem:[%s1210 + $0x122] sm:$0xff]
      %v1622 = vld [vmem:[%s1210 + $0x12a] sm:$0xff]
      %v1623 = vld [vmem:[%s1210 + $0x13a] sm:$0xff]
      %v1624 = vld [vmem:[%s1210 + $0x142] sm:$0xff]
      %v1625 = vld [vmem:[%s1210 + $0x152] sm:$0xff]
      %v1626 = vld [vmem:[%s1210 + $0x15a] sm:$0xff]
      %v1627 = vld [vmem:[%s1210 + $0x16a] sm:$0xff]
      %v1628 = vld [vmem:[%s1210 + $0x172] sm:$0xff]
      %1661 = vrot.lane.b32.xlu0 %v1597, 64
      %v1662 = vpop.permute.xlu0 %1661
      %1663 = vrot.lane.b32.xlu0 %v1598, 64
      %v1664 = vpop.permute.xlu0 %1663
      %1665 = vrot.lane.b32.xlu0 %v1599, 64
      %v1666 = vpop.permute.xlu0 %1665
      %1667 = vrot.lane.b32.xlu0 %v1600, 64
      %v1668 = vpop.permute.xlu0 %1667
      %1669 = vrot.lane.b32.xlu0 %v1601, 64
      %v1670 = vpop.permute.xlu0 %1669
      %1671 = vrot.lane.b32.xlu0 %v1602, 64
      %v1672 = vpop.permute.xlu0 %1671
      %1673 = vrot.lane.b32.xlu0 %v1603, 64
      %v1674 = vpop.permute.xlu0 %1673
      %1675 = vrot.lane.b32.xlu0 %v1604, 64
      %v1676 = vpop.permute.xlu0 %1675
      %1677 = vrot.lane.b32.xlu0 %v1605, 64
      %v1678 = vpop.permute.xlu0 %1677
      %1679 = vrot.lane.b32.xlu0 %v1606, 64
      %v1680 = vpop.permute.xlu0 %1679
      %1681 = vrot.lane.b32.xlu0 %v1607, 64
      %v1682 = vpop.permute.xlu0 %1681
      %1683 = vrot.lane.b32.xlu0 %v1608, 64
      %v1684 = vpop.permute.xlu0 %1683
      %1685 = vrot.lane.b32.xlu0 %v1609, 64
      %v1686 = vpop.permute.xlu0 %1685
      %1687 = vrot.lane.b32.xlu0 %v1610, 64
      %v1688 = vpop.permute.xlu0 %1687
      %1689 = vrot.lane.b32.xlu0 %v1611, 64
      %v1690 = vpop.permute.xlu0 %1689
      %1691 = vrot.lane.b32.xlu0 %v1612, 64
      %v1692 = vpop.permute.xlu0 %1691
      %1693 = vrot.lane.b32.xlu0 %v1613, 64
      %v1694 = vpop.permute.xlu0 %1693
      %1695 = vrot.lane.b32.xlu0 %v1614, 64
      %v1696 = vpop.permute.xlu0 %1695
      %1697 = vrot.lane.b32.xlu0 %v1615, 64
      %v1698 = vpop.permute.xlu0 %1697
      %1699 = vrot.lane.b32.xlu0 %v1616, 64
      %v1700 = vpop.permute.xlu0 %1699
      %1701 = vrot.lane.b32.xlu0 %v1617, 64
      %v1702 = vpop.permute.xlu0 %1701
      %1703 = vrot.lane.b32.xlu0 %v1618, 64
      %v1704 = vpop.permute.xlu0 %1703
      %1705 = vrot.lane.b32.xlu0 %v1619, 64
      %v1706 = vpop.permute.xlu0 %1705
      %1707 = vrot.lane.b32.xlu0 %v1620, 64
      %v1708 = vpop.permute.xlu0 %1707
      %1709 = vrot.lane.b32.xlu0 %v1621, 64
      %v1710 = vpop.permute.xlu0 %1709
      %1711 = vrot.lane.b32.xlu0 %v1622, 64
      %v1712 = vpop.permute.xlu0 %1711
      %1713 = vrot.lane.b32.xlu0 %v1623, 64
      %v1714 = vpop.permute.xlu0 %1713
      %1715 = vrot.lane.b32.xlu0 %v1624, 64
      %v1716 = vpop.permute.xlu0 %1715
      %1717 = vrot.lane.b32.xlu0 %v1625, 64
      %v1718 = vpop.permute.xlu0 %1717
      %1719 = vrot.lane.b32.xlu0 %v1626, 64
      %v1720 = vpop.permute.xlu0 %1719
      %1721 = vrot.lane.b32.xlu0 %v1627, 64
      %v1722 = vpop.permute.xlu0 %1721
      %1723 = vrot.lane.b32.xlu0 %v1628, 64
      %v1724 = vpop.permute.xlu0 %1723
      %vm1757 = vcmask 589312
      %1758 = vst.msk [vmem:[#allocation2] sm:$0xff] %vm1757, %v1662
      %1759 = vst.msk [vmem:[#allocation2 + $0x8] sm:$0xff] %vm1757, %v1664
      %1760 = vst.msk [vmem:[#allocation2 + $0x10] sm:$0xff] %vm1757, %v1666
      %1761 = vst.msk [vmem:[#allocation2 + $0x18] sm:$0xff] %vm1757, %v1668
      %1762 = vst.msk [vmem:[#allocation2 + $0x20] sm:$0xff] %vm1757, %v1670
      %1763 = vst.msk [vmem:[#allocation2 + $0x28] sm:$0xff] %vm1757, %v1672
      %1764 = vst.msk [vmem:[#allocation2 + $0x30] sm:$0xff] %vm1757, %v1674
      %1765 = vst.msk [vmem:[#allocation2 + $0x38] sm:$0xff] %vm1757, %v1676
      %1766 = vst.msk [vmem:[#allocation2 + $0x40] sm:$0xff] %vm1757, %v1678
      %1767 = vst.msk [vmem:[#allocation2 + $0x48] sm:$0xff] %vm1757, %v1680
      %1768 = vst.msk [vmem:[#allocation2 + $0x50] sm:$0xff] %vm1757, %v1682
      %1769 = vst.msk [vmem:[#allocation2 + $0x58] sm:$0xff] %vm1757, %v1684
      %1770 = vst.msk [vmem:[#allocation2 + $0x60] sm:$0xff] %vm1757, %v1686
      %1771 = vst.msk [vmem:[#allocation2 + $0x68] sm:$0xff] %vm1757, %v1688
      %1772 = vst.msk [vmem:[#allocation2 + $0x70] sm:$0xff] %vm1757, %v1690
      %1773 = vst.msk [vmem:[#allocation2 + $0x78] sm:$0xff] %vm1757, %v1692
      %1774 = vst.msk [vmem:[#allocation2 + $0x80] sm:$0xff] %vm1757, %v1694
      %1775 = vst.msk [vmem:[#allocation2 + $0x88] sm:$0xff] %vm1757, %v1696
      %1776 = vst.msk [vmem:[#allocation2 + $0x90] sm:$0xff] %vm1757, %v1698
      %1777 = vst.msk [vmem:[#allocation2 + $0x98] sm:$0xff] %vm1757, %v1700
      %1778 = vst.msk [vmem:[#allocation2 + $0xa0] sm:$0xff] %vm1757, %v1702
      %1779 = vst.msk [vmem:[#allocation2 + $0xa8] sm:$0xff] %vm1757, %v1704
      %1780 = vst.msk [vmem:[#allocation2 + $0xb0] sm:$0xff] %vm1757, %v1706
      %1781 = vst.msk [vmem:[#allocation2 + $0xb8] sm:$0xff] %vm1757, %v1708
      %1782 = vst.msk [vmem:[#allocation2 + $0xc0] sm:$0xff] %vm1757, %v1710
      %1783 = vst.msk [vmem:[#allocation2 + $0xc8] sm:$0xff] %vm1757, %v1712
      %1784 = vst.msk [vmem:[#allocation2 + $0xd0] sm:$0xff] %vm1757, %v1714
      %1785 = vst.msk [vmem:[#allocation2 + $0xd8] sm:$0xff] %vm1757, %v1716
      %1786 = vst.msk [vmem:[#allocation2 + $0xe0] sm:$0xff] %vm1757, %v1718
      %1787 = vst.msk [vmem:[#allocation2 + $0xe8] sm:$0xff] %vm1757, %v1720
      %1788 = vst.msk [vmem:[#allocation2 + $0xf0] sm:$0xff] %vm1757, %v1722
      %1789 = vst.msk [vmem:[#allocation2 + $0xf8] sm:$0xff] %vm1757, %v1724
      %v1790 = vld [vmem:[#allocation2] sm:$0xff]
      %v1791 = vld [vmem:[#allocation2 + $0x8] sm:$0xff]
      %v1792 = vld [vmem:[#allocation2 + $0x10] sm:$0xff]
      %v1793 = vld [vmem:[#allocation2 + $0x18] sm:$0xff]
      %v1794 = vld [vmem:[#allocation2 + $0x20] sm:$0xff]
      %v1795 = vld [vmem:[#allocation2 + $0x28] sm:$0xff]
      %v1796 = vld [vmem:[#allocation2 + $0x30] sm:$0xff]
      %v1797 = vld [vmem:[#allocation2 + $0x38] sm:$0xff]
      %v1798 = vld [vmem:[#allocation2 + $0x40] sm:$0xff]
      %v1799 = vld [vmem:[#allocation2 + $0x48] sm:$0xff]
      %v1800 = vld [vmem:[#allocation2 + $0x50] sm:$0xff]
      %v1801 = vld [vmem:[#allocation2 + $0x58] sm:$0xff]
      %v1802 = vld [vmem:[#allocation2 + $0x60] sm:$0xff]
      %v1803 = vld [vmem:[#allocation2 + $0x68] sm:$0xff]
      %v1804 = vld [vmem:[#allocation2 + $0x70] sm:$0xff]
      %v1805 = vld [vmem:[#allocation2 + $0x78] sm:$0xff]
      %v1806 = vld [vmem:[#allocation2 + $0x80] sm:$0xff]
      %v1807 = vld [vmem:[#allocation2 + $0x88] sm:$0xff]
      %v1808 = vld [vmem:[#allocation2 + $0x90] sm:$0xff]
      %v1809 = vld [vmem:[#allocation2 + $0x98] sm:$0xff]
      %v1810 = vld [vmem:[#allocation2 + $0xa0] sm:$0xff]
      %v1811 = vld [vmem:[#allocation2 + $0xa8] sm:$0xff]
      %v1812 = vld [vmem:[#allocation2 + $0xb0] sm:$0xff]
      %v1813 = vld [vmem:[#allocation2 + $0xb8] sm:$0xff]
      %v1814 = vld [vmem:[#allocation2 + $0xc0] sm:$0xff]
      %v1815 = vld [vmem:[#allocation2 + $0xc8] sm:$0xff]
      %v1816 = vld [vmem:[#allocation2 + $0xd0] sm:$0xff]
      %v1817 = vld [vmem:[#allocation2 + $0xd8] sm:$0xff]
      %v1818 = vld [vmem:[#allocation2 + $0xe0] sm:$0xff]
      %v1819 = vld [vmem:[#allocation2 + $0xe8] sm:$0xff]
      %v1820 = vld [vmem:[#allocation2 + $0xf0] sm:$0xff]
      %v1821 = vld [vmem:[#allocation2 + $0xf8] sm:$0xff]
      %v1822 = vld [vmem:[%s1] sm:$0xff]
      %v1823 = vld [vmem:[%s1 + $0x8] sm:$0xff]
      %v1824 = vld [vmem:[%s1 + $0x10] sm:$0xff]
      %v1825 = vld [vmem:[%s1 + $0x18] sm:$0xff]
      %v1826 = vld [vmem:[%s1 + $0x20] sm:$0xff]
      %v1827 = vld [vmem:[%s1 + $0x28] sm:$0xff]
      %v1828 = vld [vmem:[%s1 + $0x30] sm:$0xff]
      %v1829 = vld [vmem:[%s1 + $0x38] sm:$0xff]
      %v1830 = vld [vmem:[%s1 + $0x40] sm:$0xff]
      %v1831 = vld [vmem:[%s2] sm:$0x1]
      %v1833 = vlaneseq
      %v1834 = vshrl.u32 %v1833, 7
      %v1835 = vsub.s32 0, %v1834
      %v1836 = vrot.slane %v1831, %v1835
      %vm1838 = vcmask 588800
      %v1840 = vsel %vm1838, %v1790, 0
      %v1843 = vsel %vm1838, %v1791, 0
      %v1846 = vsel %vm1838, %v1792, 0
      %v1849 = vsel %vm1838, %v1793, 0
      %v1852 = vsel %vm1838, %v1794, 0
      %v1855 = vsel %vm1838, %v1795, 0
      %v1858 = vsel %vm1838, %v1796, 0
      %v1861 = vsel %vm1838, %v1797, 0
      %v1864 = vsel %vm1838, %v1798, 0
      %v1867 = vsel %vm1838, %v1799, 0
      %v1870 = vsel %vm1838, %v1800, 0
      %v1873 = vsel %vm1838, %v1801, 0
      %v1876 = vsel %vm1838, %v1802, 0
      %v1879 = vsel %vm1838, %v1803, 0
      %v1882 = vsel %vm1838, %v1804, 0
      %v1885 = vsel %vm1838, %v1805, 0
      %v1888 = vsel %vm1838, %v1806, 0
      %v1891 = vsel %vm1838, %v1807, 0
      %v1894 = vsel %vm1838, %v1808, 0
      %v1897 = vsel %vm1838, %v1809, 0
      %v1900 = vsel %vm1838, %v1810, 0
      %v1903 = vsel %vm1838, %v1811, 0
      %v1906 = vsel %vm1838, %v1812, 0
      %v1909 = vsel %vm1838, %v1813, 0
      %v1912 = vsel %vm1838, %v1814, 0
      %v1915 = vsel %vm1838, %v1815, 0
      %v1918 = vsel %vm1838, %v1816, 0
      %v1921 = vsel %vm1838, %v1817, 0
      %v1924 = vsel %vm1838, %v1818, 0
      %v1927 = vsel %vm1838, %v1819, 0
      %v1930 = vsel %vm1838, %v1820, 0
      %v1933 = vsel %vm1838, %v1821, 0
      %1935 = vmatprep.subr.mxu0 0.0
      %1936 = vmatpush1.msra.mxu0 %v1822
      %1937 = vmatprep.subr.mxu0 0.0
      %1938 = vmatpush1.msra.mxu0 %v1823
      %1939 = vmatprep.subr.mxu0 0.0
      %1940 = vmatpush1.msra.mxu0 %v1824
      %1941 = vmatprep.subr.mxu0 0.0
      %1942 = vmatpush1.msra.mxu0 %v1825
      %1943 = vmatprep.subr.mxu0 0.0
      %1944 = vmatpush1.msra.mxu0 %v1826
      %1945 = vmatprep.subr.mxu0 0.0
      %1946 = vmatpush1.msra.mxu0 %v1827
      %1947 = vmatprep.subr.mxu0 0.0
      %1948 = vmatpush1.msra.mxu0 %v1828
      %1949 = vmatprep.subr.mxu0 0.0
      %1950 = vmatpush1.msra.mxu0 %v1829
      %1951 = vmatprep.subr.mxu0 0.0
      %1952 = vmatpush1.msra.mxu0 %v1830
      %1953 = vmatprep.subr.mxu0 0.0
      %1954 = vmatpush1.msra.mxu0 0.0
      %1955 = vmatprep.subr.mxu0 0.0
      %1956 = vmatpush1.msra.mxu0 0.0
      %1957 = vmatprep.subr.mxu0 0.0
      %1958 = vmatpush1.msra.mxu0 0.0
      %1959 = vmatprep.subr.mxu0 0.0
      %1960 = vmatpush1.msra.mxu0 0.0
      %1961 = vmatprep.subr.mxu0 0.0
      %1962 = vmatpush1.msra.mxu0 0.0
      %1963 = vmatprep.subr.mxu0 0.0
      %1964 = vmatpush1.msra.mxu0 0.0
      %1965 = vmatprep.subr.mxu0 0.0
      %1966 = vmatpush1.msra.mxu0 0.0
      %1967 = vmatprep.subr.mxu0 0.0
      %1968 = vmatpush1.msra.mxu0 0.0
      %1969 = vmatprep.subr.mxu0 0.0
      %1970 = vmatpush1.msra.mxu0 0.0
      %1971 = vmatprep.subr.mxu0 0.0
      %1972 = vmatpush1.msra.mxu0 0.0
      %1973 = vmatprep.subr.mxu0 0.0
      %1974 = vmatpush1.msra.mxu0 0.0
      %1975 = vmatprep.subr.mxu0 0.0
      %1976 = vmatpush1.msra.mxu0 0.0
      %1977 = vmatprep.subr.mxu0 0.0
      %1978 = vmatpush1.msra.mxu0 0.0
      %1979 = vmatprep.subr.mxu0 0.0
      %1980 = vmatpush1.msra.mxu0 0.0
      %1981 = vmatprep.subr.mxu0 0.0
      %1982 = vmatpush1.msra.mxu0 0.0
      %1983 = vmatprep.subr.mxu0 0.0
      %1984 = vmatpush1.msra.mxu0 0.0
      %1985 = vmatprep.subr.mxu0 0.0
      %1986 = vmatpush1.msra.mxu0 0.0
      %1987 = vmatprep.subr.mxu0 0.0
      %1988 = vmatpush1.msra.mxu0 0.0
      %1989 = vmatprep.subr.mxu0 0.0
      %1990 = vmatpush1.msra.mxu0 0.0
      %1991 = vmatprep.subr.mxu0 0.0
      %1992 = vmatpush1.msra.mxu0 0.0
      %1993 = vmatprep.subr.mxu0 0.0
      %1994 = vmatpush1.msra.mxu0 0.0
      %1995 = vmatprep.subr.mxu0 0.0
      %1996 = vmatpush1.msra.mxu0 0.0
      %1997 = vmatprep.subr.mxu0 0.0
      %1998 = vmatpush1.msra.mxu0 0.0
      %1999 = vmatprep.mubr.f32.mxu0 0.0
      %2000 = vmatmul.mubr.f32.gmra.mrb[0].mxu0 %v1840
      %v2001 = vpop.f32.mrb[0].mxu0
      %v2002 = vadd.f32 %v1836, %v2001
      %v2003 = vpop.f32.mrb[0].mxu0
      %2004 = vmatprep.mubr.f32.mxu0 0.0
      %2005 = vmatmul.mubr.f32.gmra.mrb[0].mxu0 %v1843
      %v2006 = vpop.f32.mrb[0].mxu0
      %v2007 = vadd.f32 %v1836, %v2006
      %v2008 = vpop.f32.mrb[0].mxu0
      %2009 = vmatprep.mubr.f32.mxu0 0.0
      %2010 = vmatmul.mubr.f32.gmra.mrb[0].mxu0 %v1846
      %v2011 = vpop.f32.mrb[0].mxu0
      %v2012 = vadd.f32 %v1836, %v2011
      %v2013 = vpop.f32.mrb[0].mxu0
      %2014 = vmatprep.mubr.f32.mxu0 0.0
      %2015 = vmatmul.mubr.f32.gmra.mrb[0].mxu0 %v1849
      %v2016 = vpop.f32.mrb[0].mxu0
      %v2017 = vadd.f32 %v1836, %v2016
      %v2018 = vpop.f32.mrb[0].mxu0
      %2019 = vmatprep.mubr.f32.mxu0 0.0
      %2020 = vmatmul.mubr.f32.gmra.mrb[0].mxu0 %v1852
      %v2021 = vpop.f32.mrb[0].mxu0
      %v2022 = vadd.f32 %v1836, %v2021
      %v2023 = vpop.f32.mrb[0].mxu0
      %2024 = vmatprep.mubr.f32.mxu0 0.0
      %2025 = vmatmul.mubr.f32.gmra.mrb[0].mxu0 %v1855
      %v2026 = vpop.f32.mrb[0].mxu0
      %v2027 = vadd.f32 %v1836, %v2026
      %v2028 = vpop.f32.mrb[0].mxu0
      %2029 = vmatprep.mubr.f32.mxu0 0.0
      %2030 = vmatmul.mubr.f32.gmra.mrb[0].mxu0 %v1858
      %v2031 = vpop.f32.mrb[0].mxu0
      %v2032 = vadd.f32 %v1836, %v2031
      %v2033 = vpop.f32.mrb[0].mxu0
      %2034 = vmatprep.mubr.f32.mxu0 0.0
      %2035 = vmatmul.mubr.f32.gmra.mrb[0].mxu0 %v1861
      %v2036 = vpop.f32.mrb[0].mxu0
      %v2037 = vadd.f32 %v1836, %v2036
      %v2038 = vpop.f32.mrb[0].mxu0
      %2039 = vmatprep.mubr.f32.mxu0 0.0
      %2040 = vmatmul.mubr.f32.gmra.mrb[0].mxu0 %v1864
      %v2041 = vpop.f32.mrb[0].mxu0
      %v2042 = vadd.f32 %v1836, %v2041
      %v2043 = vpop.f32.mrb[0].mxu0
      %2044 = vmatprep.mubr.f32.mxu0 0.0
      %2045 = vmatmul.mubr.f32.gmra.mrb[0].mxu0 %v1867
      %v2046 = vpop.f32.mrb[0].mxu0
      %v2047 = vadd.f32 %v1836, %v2046
      %v2048 = vpop.f32.mrb[0].mxu0
      %2049 = vmatprep.mubr.f32.mxu0 0.0
      %2050 = vmatmul.mubr.f32.gmra.mrb[0].mxu0 %v1870
      %v2051 = vpop.f32.mrb[0].mxu0
      %v2052 = vadd.f32 %v1836, %v2051
      %v2053 = vpop.f32.mrb[0].mxu0
      %2054 = vmatprep.mubr.f32.mxu0 0.0
      %2055 = vmatmul.mubr.f32.gmra.mrb[0].mxu0 %v1873
      %v2056 = vpop.f32.mrb[0].mxu0
      %v2057 = vadd.f32 %v1836, %v2056
      %v2058 = vpop.f32.mrb[0].mxu0
      %2059 = vmatprep.mubr.f32.mxu0 0.0
      %2060 = vmatmul.mubr.f32.gmra.mrb[0].mxu0 %v1876
      %v2061 = vpop.f32.mrb[0].mxu0
      %v2062 = vadd.f32 %v1836, %v2061
      %v2063 = vpop.f32.mrb[0].mxu0
      %2064 = vmatprep.mubr.f32.mxu0 0.0
      %2065 = vmatmul.mubr.f32.gmra.mrb[0].mxu0 %v1879
      %v2066 = vpop.f32.mrb[0].mxu0
      %v2067 = vadd.f32 %v1836, %v2066
      %v2068 = vpop.f32.mrb[0].mxu0
      %2069 = vmatprep.mubr.f32.mxu0 0.0
      %2070 = vmatmul.mubr.f32.gmra.mrb[0].mxu0 %v1882
      %v2071 = vpop.f32.mrb[0].mxu0
      %v2072 = vadd.f32 %v1836, %v2071
      %v2073 = vpop.f32.mrb[0].mxu0
      %2074 = vmatprep.mubr.f32.mxu0 0.0
      %2075 = vmatmul.mubr.f32.gmra.mrb[0].mxu0 %v1885
      %v2076 = vpop.f32.mrb[0].mxu0
      %v2077 = vadd.f32 %v1836, %v2076
      %v2078 = vpop.f32.mrb[0].mxu0
      %2079 = vmatprep.mubr.f32.mxu0 0.0
      %2080 = vmatmul.mubr.f32.gmra.mrb[0].mxu0 %v1888
      %v2081 = vpop.f32.mrb[0].mxu0
      %v2082 = vadd.f32 %v1836, %v2081
      %v2083 = vpop.f32.mrb[0].mxu0
      %2084 = vmatprep.mubr.f32.mxu0 0.0
      %2085 = vmatmul.mubr.f32.gmra.mrb[0].mxu0 %v1891
      %v2086 = vpop.f32.mrb[0].mxu0
      %v2087 = vadd.f32 %v1836, %v2086
      %v2088 = vpop.f32.mrb[0].mxu0
      %2089 = vmatprep.mubr.f32.mxu0 0.0
      %2090 = vmatmul.mubr.f32.gmra.mrb[0].mxu0 %v1894
      %v2091 = vpop.f32.mrb[0].mxu0
      %v2092 = vadd.f32 %v1836, %v2091
      %v2093 = vpop.f32.mrb[0].mxu0
      %2094 = vmatprep.mubr.f32.mxu0 0.0
      %2095 = vmatmul.mubr.f32.gmra.mrb[0].mxu0 %v1897
      %v2096 = vpop.f32.mrb[0].mxu0
      %v2097 = vadd.f32 %v1836, %v2096
      %v2098 = vpop.f32.mrb[0].mxu0
      %2099 = vmatprep.mubr.f32.mxu0 0.0
      %2100 = vmatmul.mubr.f32.gmra.mrb[0].mxu0 %v1900
      %v2101 = vpop.f32.mrb[0].mxu0
      %v2102 = vadd.f32 %v1836, %v2101
      %v2103 = vpop.f32.mrb[0].mxu0
      %2104 = vmatprep.mubr.f32.mxu0 0.0
      %2105 = vmatmul.mubr.f32.gmra.mrb[0].mxu0 %v1903
      %v2106 = vpop.f32.mrb[0].mxu0
      %v2107 = vadd.f32 %v1836, %v2106
      %v2108 = vpop.f32.mrb[0].mxu0
      %2109 = vmatprep.mubr.f32.mxu0 0.0
      %2110 = vmatmul.mubr.f32.gmra.mrb[0].mxu0 %v1906
      %v2111 = vpop.f32.mrb[0].mxu0
      %v2112 = vadd.f32 %v1836, %v2111
      %v2113 = vpop.f32.mrb[0].mxu0
      %2114 = vmatprep.mubr.f32.mxu0 0.0
      %2115 = vmatmul.mubr.f32.gmra.mrb[0].mxu0 %v1909
      %v2116 = vpop.f32.mrb[0].mxu0
      %v2117 = vadd.f32 %v1836, %v2116
      %v2118 = vpop.f32.mrb[0].mxu0
      %2119 = vmatprep.mubr.f32.mxu0 0.0
      %2120 = vmatmul.mubr.f32.gmra.mrb[0].mxu0 %v1912
      %v2121 = vpop.f32.mrb[0].mxu0
      %v2122 = vadd.f32 %v1836, %v2121
      %v2123 = vpop.f32.mrb[0].mxu0
      %2124 = vmatprep.mubr.f32.mxu0 0.0
      %2125 = vmatmul.mubr.f32.gmra.mrb[0].mxu0 %v1915
      %v2126 = vpop.f32.mrb[0].mxu0
      %v2127 = vadd.f32 %v1836, %v2126
      %v2128 = vpop.f32.mrb[0].mxu0
      %2129 = vmatprep.mubr.f32.mxu0 0.0
      %2130 = vmatmul.mubr.f32.gmra.mrb[0].mxu0 %v1918
      %v2131 = vpop.f32.mrb[0].mxu0
      %v2132 = vadd.f32 %v1836, %v2131
      %v2133 = vpop.f32.mrb[0].mxu0
      %2134 = vmatprep.mubr.f32.mxu0 0.0
      %2135 = vmatmul.mubr.f32.gmra.mrb[0].mxu0 %v1921
      %v2136 = vpop.f32.mrb[0].mxu0
      %v2137 = vadd.f32 %v1836, %v2136
      %v2138 = vpop.f32.mrb[0].mxu0
      %2139 = vmatprep.mubr.f32.mxu0 0.0
      %2140 = vmatmul.mubr.f32.gmra.mrb[0].mxu0 %v1924
      %v2141 = vpop.f32.mrb[0].mxu0
      %v2142 = vadd.f32 %v1836, %v2141
      %v2143 = vpop.f32.mrb[0].mxu0
      %2144 = vmatprep.mubr.f32.mxu0 0.0
      %2145 = vmatmul.mubr.f32.gmra.mrb[0].mxu0 %v1927
      %v2146 = vpop.f32.mrb[0].mxu0
      %v2147 = vadd.f32 %v1836, %v2146
      %v2148 = vpop.f32.mrb[0].mxu0
      %2149 = vmatprep.mubr.f32.mxu0 0.0
      %2150 = vmatmul.mubr.f32.gmra.mrb[0].mxu0 %v1930
      %v2151 = vpop.f32.mrb[0].mxu0
      %v2152 = vadd.f32 %v1836, %v2151
      %v2153 = vpop.f32.mrb[0].mxu0
      %2154 = vmatprep.mubr.f32.mxu0 0.0
      %2155 = vmatmul.mubr.f32.gmra.mrb[0].mxu0 %v1933
      %v2156 = vpop.f32.mrb[0].mxu0
      %v2157 = vadd.f32 %v1836, %v2156
      %v2158 = vpop.f32.mrb[0].mxu0
      %2159 = vdwg.mxu0
      %2160 = vst [vmem:[%s177] sm:$0xff] %v2002
      %2161 = vst [vmem:[%s177 + $0x8] sm:$0xff] %v2007
      %2162 = vst [vmem:[%s177 + $0x10] sm:$0xff] %v2012
      %2163 = vst [vmem:[%s177 + $0x18] sm:$0xff] %v2017
      %2164 = vst [vmem:[%s177 + $0x20] sm:$0xff] %v2022
      %2165 = vst [vmem:[%s177 + $0x28] sm:$0xff] %v2027
      %2166 = vst [vmem:[%s177 + $0x30] sm:$0xff] %v2032
      %2167 = vst [vmem:[%s177 + $0x38] sm:$0xff] %v2037
      %2168 = vst [vmem:[%s177 + $0x40] sm:$0xff] %v2042
      %2169 = vst [vmem:[%s177 + $0x48] sm:$0xff] %v2047
      %2170 = vst [vmem:[%s177 + $0x50] sm:$0xff] %v2052
      %2171 = vst [vmem:[%s177 + $0x58] sm:$0xff] %v2057
      %2172 = vst [vmem:[%s177 + $0x60] sm:$0xff] %v2062
      %2173 = vst [vmem:[%s177 + $0x68] sm:$0xff] %v2067
      %2174 = vst [vmem:[%s177 + $0x70] sm:$0xff] %v2072
      %2175 = vst [vmem:[%s177 + $0x78] sm:$0xff] %v2077
      %2176 = vst [vmem:[%s177 + $0x80] sm:$0xff] %v2082
      %2177 = vst [vmem:[%s177 + $0x88] sm:$0xff] %v2087
      %2178 = vst [vmem:[%s177 + $0x90] sm:$0xff] %v2092
      %2179 = vst [vmem:[%s177 + $0x98] sm:$0xff] %v2097
      %2180 = vst [vmem:[%s177 + $0xa0] sm:$0xff] %v2102
      %2181 = vst [vmem:[%s177 + $0xa8] sm:$0xff] %v2107
      %2182 = vst [vmem:[%s177 + $0xb0] sm:$0xff] %v2112
      %2183 = vst [vmem:[%s177 + $0xb8] sm:$0xff] %v2117
      %2184 = vst [vmem:[%s177 + $0xc0] sm:$0xff] %v2122
      %2185 = vst [vmem:[%s177 + $0xc8] sm:$0xff] %v2127
      %2186 = vst [vmem:[%s177 + $0xd0] sm:$0xff] %v2132
      %2187 = vst [vmem:[%s177 + $0xd8] sm:$0xff] %v2137
      %2188 = vst [vmem:[%s177 + $0xe0] sm:$0xff] %v2142
      %2189 = vst [vmem:[%s177 + $0xe8] sm:$0xff] %v2147
      %2190 = vst [vmem:[%s177 + $0xf0] sm:$0xff] %v2152
      %2191 = vst [vmem:[%s177 + $0xf8] sm:$0xff] %v2157
      %s2192 = smul.u32 8, %s14
      %p2193 = scmp.lt.s32.totalorder %s2192, 15
      %s2194 = scalar_select %p2193, %s2192, 15
      %s2195 = smul.addr %s2194, 4
      %s2196 = smul.addr %s2195, 8
      %s2197 = scalar_lea.vmem %s3, %s2196
      // Predicated region
      $region33: #{custom_conv2d_forward.1} parent=31 // pred_check
        %p2198 = pneg %p100
      $region34: #{custom_conv2d_forward.1} parent=31 // pred_check_branch
        %2200 = sbr.rel (%p2198) target = $region36
      $region35: #{custom_conv2d_forward.1} parent=31 // pred_region
        %s2201 = smul.u32 8, %s14
      $region36: #{custom_conv2d_forward.1} parent=31 // pred_fallthru
        _
    $region32: #{custom_conv2d_forward.1} parent=5 // pred_fallthru
      _
    %p2202 = scmp.le.s32.totalorder 2, %s9
    // Predicated region
    $region37: #{custom_conv2d_forward.1} parent=5 // pred_check
      %p2203 = pneg %p2202
    $region38: #{custom_conv2d_forward.1} parent=5 // pred_check_branch
      %2205 = sbr.rel (%p2203) target = $region40
    $region39: #{custom_conv2d_forward.1} parent=5 // pred_region
      %s2206 = ssub.s32 %s9, 2
      // Predicated region
      $region41: #{custom_conv2d_forward.1} parent=39 // pred_check
        %p2207 = pneg %p106
      $region42: #{custom_conv2d_forward.1} parent=39 // pred_check_branch
        %2209 = sbr.rel (%p2207) target = $region44
      $region43: #{custom_conv2d_forward.1} parent=39 // pred_region
        %s2210 = smul.u32 8, %s15
        %p2211 = scmp.lt.s32.totalorder %s2210, 15
        %s2212 = scalar_select %p2211, %s2210, 15
        %s2213 = smul.addr %s2212, 4
        %s2214 = smul.addr %s2213, 8
        %s2215 = scalar_lea.vmem %s3, %s2214
      $region44: #{custom_conv2d_forward.1} parent=39 // pred_fallthru
        _
    $region40: #{custom_conv2d_forward.1} parent=5 // pred_fallthru
      _
  $region6: #{custom_conv2d_forward.1} parent=0 // loop_footer
    %s13 = sadd.s32 1, %s9
  $region7: #{custom_conv2d_forward.1} parent=0 // loop_footer_branch
    %8 = sbr.rel target = $region3
  $region8: #{custom_conv2d_forward.1} parent=0 // loop_exit
    _

</llo_original>
